<compile_context>
chip_gen: v6e
topology: v6e:2x2x1
jax: 0.10.0
libtpu: 0.0.40
codegen_flags: <defaults>
</compile_context>

<pallas_src>
import functools

import jax
import jax.numpy as jnp
from jax import lax
from jax.experimental import pallas as pl
from jax.experimental.pallas import tpu as pltpu

EPS = 1e-5  # torch.nn.LayerNorm default


def _round_up(n, m):
    return ((n + m - 1) // m) * m


@functools.lru_cache(maxsize=None)
def _vmem_limit_bytes():
    """Generation-aware scoped-VMEM limit: 64 MiB on v5e/v6e, 32 MiB on v7x."""
    try:
        cap = pltpu.get_tpu_info().vmem_capacity_bytes
    except Exception:                       # conservative fallback
        cap = 64 * 1024 * 1024
    return int(min(cap // 2, 64 * 1024 * 1024))


# ---------------------------------------------------------------------------
# Fused IDCNN block kernel:
#   conv(K=3,d=1) -> ReLU -> LN_over_C -> conv(K=3,d=1) -> conv(K=3,d=2)
#   [-> ReLU -> LN_over_C   (top-level, fused only after block 0)]
# One grid step = one batch row with the full (C, Lp) slab resident in VMEM.
# ---------------------------------------------------------------------------
def _shift_right_zero(p, d):
    """out[:, l] = p[:, l-d] for l >= d else 0  (zero 'same' padding, left)."""
    col = lax.broadcasted_iota(jnp.int32, p.shape, 1)
    return jnp.where(col >= d, pltpu.roll(p, shift=d, axis=1), 0.0)


def _shift_left_zero(p, d):
    """out[:, l] = p[:, l+d] for l < Lp-d else 0 (zero 'same' padding, right)."""
    n = p.shape[1]
    col = lax.broadcasted_iota(jnp.int32, p.shape, 1)
    return jnp.where(col < n - d, pltpu.roll(p, shift=(n - d) % n, axis=1), 0.0)


def _ln_over_channels(h):
    """LayerNorm over axis 0 (channels), elementwise_affine=False, biased var."""
    mean = jnp.mean(h, axis=0, keepdims=True)
    c = h - mean
    var = jnp.mean(c * c, axis=0, keepdims=True)
    return c * lax.rsqrt(var + EPS)


def _conv3_same(x, w_ref, b_ref, dil):
    """K=3 dilated 'same' conv as 3 MXU matmuls + XLU lane shifts.
    x: (C_in, Lp) f32; w_ref: (3, C_out, C_in); b_ref: (C_out, 1)."""
    p0 = jnp.dot(w_ref[0].astype(jnp.float32), x, preferred_element_type=jnp.float32)
    p1 = jnp.dot(w_ref[1].astype(jnp.float32), x, preferred_element_type=jnp.float32)
    p2 = jnp.dot(w_ref[2].astype(jnp.float32), x, preferred_element_type=jnp.float32)
    y = p1 + _shift_right_zero(p0, dil) + _shift_left_zero(p2, dil)
    return y + b_ref[...].astype(jnp.float32)


def _idcnn_block_kernel(x_ref, w0_ref, b0_ref, w1_ref, b1_ref, w2_ref, b2_ref,
                        o_ref, *, valid_len, fuse_final_relu_ln):
    x = x_ref[0].astype(jnp.float32)                       # (C, Lp)
    padded = valid_len < x.shape[1]
    if padded:
        valid = lax.broadcasted_iota(jnp.int32, x.shape, 1) < valid_len

    h = _conv3_same(x, w0_ref, b0_ref, 1)                  # layer0 (d=1)
    h = _ln_over_channels(jnp.maximum(h, 0.0))             # ReLU -> LN
    if padded:                                             # zero cols >= L so the
        h = jnp.where(valid, h, 0.0)                       # next conv sees torch's
    h = _conv3_same(h, w1_ref, b1_ref, 1)                  # zero padding; layer1
    if padded:
        h = jnp.where(valid, h, 0.0)
    h = _conv3_same(h, w2_ref, b2_ref, 2)                  # layer2 (d=2)
    if fuse_final_relu_ln:                                 # top-level ReLU -> LN
        h = _ln_over_channels(jnp.maximum(h, 0.0))         # (after block 0 only)
    if padded:
        h = jnp.where(valid, h, 0.0)
    o_ref[0] = h.astype(o_ref.dtype)


def idcnn_block_pallas(x, w0, b0, w1, b1, w2, b2, *, valid_len,
                       fuse_final_relu_ln):
    """x: (B, C, Lp), Lp a multiple of 128; wk: (3, C, C); bk: (C, 1)."""
    B, C, Lp = x.shape
    kernel = functools.partial(_idcnn_block_kernel, valid_len=valid_len,
                               fuse_final_relu_ln=fuse_final_relu_ln)
    xspec = pl.BlockSpec((1, C, Lp), lambda b: (b, 0, 0))
    wspec = pl.BlockSpec((3, C, C), lambda b: (0, 0, 0))
    bspec = pl.BlockSpec((C, 1), lambda b: (0, 0))
    return pl.pallas_call(
        kernel,
        out_shape=jax.ShapeDtypeStruct((B, C, Lp), x.dtype),
        grid_spec=pl.GridSpec(
            grid=(B,),
            in_specs=[xspec, wspec, bspec, wspec, bspec, wspec, bspec],
            out_specs=xspec),
        # TODO(synk): evaluate pltpu.CORE_PARALLEL on the batch axis for v7x's
        # 2 TensorCores once verified safe on single-TC chips.
        compiler_params=pltpu.CompilerParams(
            dimension_semantics=("parallel",),
            vmem_limit_bytes=_vmem_limit_bytes()),
    )(x, w0, b0, w1, b1, w2, b2)


def _fused_block_fits(C, Lp, itemsize, limit):
    """2x2 double-buffered I/O blocks + ~6 live f32 temps + weights <= limit."""
    io = 2 * 2 * C * Lp * itemsize
    temps = 6 * C * Lp * 4
    weights = 3 * (3 * C * C * 4 + C * 4)
    return io + temps + weights <= int(0.75 * limit)


# ---------------------------------------------------------------------------
# Fallback kernel: fused (ReLU ->) LayerNorm over channels, tiled over L.
# Used only when a full (C, L) slab per batch row would not fit VMEM.
# TODO(synk): L-halo tiling of the fused conv block kernel would remove the
# remaining XLA conv HBM round trips on this long-sequence path as well.
# ---------------------------------------------------------------------------
def _relu_ln_kernel(x_ref, o_ref, *, apply_relu):
    x = x_ref[...].astype(jnp.float32)                     # (1, C, TL)
    if apply_relu:
        x = jnp.maximum(x, 0.0)
    mean = jnp.mean(x, axis=1, keepdims=True)
    c = x - mean
    var = jnp.mean(c * c, axis=1, keepdims=True)
    o_ref[...] = (c * lax.rsqrt(var + EPS)).astype(o_ref.dtype)


def _choose_block_l(C, Lp, itemsize, limit):
    """Largest lane-dense TL (multiple of 128 dividing Lp) whose double-buffered
    I/O plus f32 temporaries stay within half the VMEM limit (no 2048 cap)."""
    budget = max(limit // 2, 2 * 1024 * 1024)
    per_col = C * (4 * itemsize + 3 * 4)    # 2 in + 2 out buffers + ~3 f32 temps
    tl = 128
    while Lp % (tl * 2) == 0 and per_col * (tl * 2) <= budget:
        tl *= 2
    return tl


def relu_layernorm_ncl(x, *, apply_relu=True, block_l=None):
    """x: (B, C, L) -> (optional ReLU then) LayerNorm over C. Same shape/dtype."""
    B, C, L = x.shape
    limit = _vmem_limit_bytes()
    Lp = _round_up(L, 128)                                 # lane-dense stores
    xp = x if Lp == L else jnp.pad(x, ((0, 0), (0, 0), (0, Lp - L)))
    if block_l is None:
        block_l = _choose_block_l(C, Lp, x.dtype.itemsize, limit)
    y = pl.pallas_call(
        functools.partial(_relu_ln_kernel, apply_relu=apply_relu),
        out_shape=jax.ShapeDtypeStruct((B, C, Lp), x.dtype),
        grid_spec=pl.GridSpec(
            grid=(B, pl.cdiv(Lp, block_l)),
            in_specs=[pl.BlockSpec((1, C, block_l), lambda b, l: (b, 0, l))],
            out_specs=pl.BlockSpec((1, C, block_l), lambda b, l: (b, 0, l))),
        compiler_params=pltpu.CompilerParams(
            dimension_semantics=("parallel", "parallel"),
            vmem_limit_bytes=limit),
    )(xp)
    return y if Lp == L else y[:, :, :L]


# ---------------------------------------------------------------------------
# Pure-JAX / XLA building blocks (reference path and long-sequence fallback).
# ---------------------------------------------------------------------------
def relu_layernorm_ref(x, apply_relu=True):
    xf = x.astype(jnp.float32)
    if apply_relu:
        xf = jnp.maximum(xf, 0.0)
    mean = jnp.mean(xf, axis=1, keepdims=True)
    var = jnp.mean((xf - mean) ** 2, axis=1, keepdims=True)
    return ((xf - mean) * lax.rsqrt(var + EPS)).astype(x.dtype)


def _conv1d_same(x, w, b, dilation):
    """x: (B, C, L); w: (C_out, C_in, K) torch layout; padding = K//2 + d - 1."""
    pad = w.shape[-1] // 2 + dilation - 1
    y = lax.conv_general_dilated(
        x, w, window_strides=(1,), padding=[(pad, pad)],
        rhs_dilation=(dilation,), dimension_numbers=("NCH", "OIH", "NCH"))
    return y + b[None, :, None]


def _linear_to_ncl(x, w, b):
    """nn.Linear(D_in, F) then permute(0,2,1): (B, L, D_in) -> (B, F, L)."""
    # TODO(synk): port this single input matmul to Pallas (negligible here).
    return jnp.einsum("bld,fd->bfl", x, w) + b[None, :, None]


# ---------------------------------------------------------------------------
# IDCNN forward.  Matches the PyTorch module semantics, including the effect
# of the overwritten 'relu'/'layernorm' keys in nn.Sequential:
#   net   = [conv0(d=1), ReLU, LN, conv1(d=1), conv2(d=2)]   (shared weights)
#   idcnn = [net, ReLU, LN, net, net, net]
# ---------------------------------------------------------------------------
def idcnn_forward(params, embeddings, num_block=4, *, use_pallas=True):
    _, L, _ = embeddings.shape
    C = params["w_lin"].shape[0]                           # filters
    h = _linear_to_ncl(embeddings, params["w_lin"], params["b_lin"])   # (B,C,L)

    if use_pallas:
        limit = _vmem_limit_bytes()
        Lp = _round_up(L, 128)
        if _fused_block_fits(C, Lp, h.dtype.itemsize, limit):
            # Fully fused path: one Pallas kernel per IDCNN block.
            if Lp != L:
                h = jnp.pad(h, ((0, 0), (0, 0), (0, Lp - L)))
            w0 = jnp.transpose(params["w0"], (2, 0, 1)); b0 = params["b0"][:, None]
            w1 = jnp.transpose(params["w1"], (2, 0, 1)); b1 = params["b1"][:, None]
            w2 = jnp.transpose(params["w2"], (2, 0, 1)); b2 = params["b2"][:, None]
            block = functools.partial(idcnn_block_pallas, w0=w0, b0=b0, w1=w1,
                                      b1=b1, w2=w2, b2=b2, valid_len=L)
            h = block(h, fuse_final_relu_ln=True)          # block0 + top ReLU+LN
            for _ in range(num_block - 1):
                h = block(h, fuse_final_relu_ln=False)     # block1 .. block3
            if Lp != L:
                h = h[:, :, :L]
            return jnp.swapaxes(h, 1, 2)                   # back to (B, L, F)
        relu_ln = lambda t: relu_layernorm_ncl(t, apply_relu=True)
    else:
        relu_ln = lambda t: relu_layernorm_ref(t, apply_relu=True)

    # Reference path / long-sequence fallback: XLA convs + fused ReLU->LN.
    def net(t):
        t = _conv1d_same(t, params["w0"], params["b0"], 1)
        t = relu_ln(t)
        t = _conv1d_same(t, params["w1"], params["b1"], 1)
        t = _conv1d_same(t, params["w2"], params["b2"], 2)
        return t

    h = net(h)
    h = relu_ln(h)
    for _ in range(num_block - 1):
        h = net(h)
    return jnp.swapaxes(h, 1, 2)


if __name__ == "__main__":
    key = jax.random.PRNGKey(0)
    B, L, D_IN, F = 2, 16, 10, 8
    ks = jax.random.split(key, 9)
    embeddings = jax.random.normal(ks[0], (B, L, D_IN), dtype=jnp.float32)
    params = {
        "w_lin": 0.3 * jax.random.normal(ks[1], (F, D_IN), jnp.float32),
        "b_lin": 0.1 * jax.random.normal(ks[2], (F,), jnp.float32),
        "w0": 0.3 * jax.random.normal(ks[3], (F, F, 3), jnp.float32),
        "b0": 0.1 * jax.random.normal(ks[4], (F,), jnp.float32),
        "w1": 0.3 * jax.random.normal(ks[5], (F, F, 3), jnp.float32),
        "b1": 0.1 * jax.random.normal(ks[6], (F,), jnp.float32),
        "w2": 0.3 * jax.random.normal(ks[7], (F, F, 3), jnp.float32),
        "b2": 0.1 * jax.random.normal(ks[8], (F,), jnp.float32),
    }

    # Full IDCNN forward: 4 fused conv->ReLU->LN Pallas block kernels.
    out = jax.jit(idcnn_forward)(params, embeddings)
    jax.block_until_ready(out)
    ref = idcnn_forward(params, embeddings, use_pallas=False)
    assert out.shape == (B, L, F)
    assert jnp.allclose(out, ref, atol=5e-3, rtol=5e-3), \
        float(jnp.max(jnp.abs(out - ref)))

    # Standalone fused-block kernel at a lane-dense shape (no-padding path).
    xb = jax.random.normal(jax.random.PRNGKey(1), (2, F, 256), jnp.float32)
    w0t = jnp.transpose(params["w0"], (2, 0, 1)); b0c = params["b0"][:, None]
    w1t = jnp.transpose(params["w1"], (2, 0, 1)); b1c = params["b1"][:, None]
    w2t = jnp.transpose(params["w2"], (2, 0, 1)); b2c = params["b2"][:, None]
    yb = idcnn_block_pallas(xb, w0t, b0c, w1t, b1c, w2t, b2c,
                            valid_len=256, fuse_final_relu_ln=True)
    jax.block_until_ready(yb)
    hr = _conv1d_same(xb, params["w0"], params["b0"], 1)
    hr = relu_layernorm_ref(hr, True)
    hr = _conv1d_same(hr, params["w1"], params["b1"], 1)
    hr = _conv1d_same(hr, params["w2"], params["b2"], 2)
    hr = relu_layernorm_ref(hr, True)
    assert jnp.allclose(yb, hr, atol=2e-3, rtol=2e-3), \
        float(jnp.max(jnp.abs(yb - hr)))

    # Fallback fused ReLU->LN kernel: bf16, unaligned L (pads 300 -> 384, 3 tiles).
    xs = jax.random.normal(jax.random.PRNGKey(2), (2, 16, 300)).astype(jnp.bfloat16)
    ys = relu_layernorm_ncl(xs, apply_relu=True, block_l=128)
    jax.block_until_ready(ys)
    rs = relu_layernorm_ref(xs, True)
    assert jnp.allclose(ys.astype(jnp.float32), rs.astype(jnp.float32),
                        atol=5e-2, rtol=5e-2)

    print("KERNEL_OK")
</pallas_src>

<mosaic_0001>
module attributes {stable_mosaic.version = 11 : i64} {
  func.func @_idcnn_block_kernel(%arg0: i32, %arg1: memref<1x8x128xf32, #tpu.memory_space<vmem>>, %arg2: memref<3x8x8xf32, #tpu.memory_space<vmem>>, %arg3: memref<8x1xf32, #tpu.memory_space<vmem>>, %arg4: memref<3x8x8xf32, #tpu.memory_space<vmem>>, %arg5: memref<8x1xf32, #tpu.memory_space<vmem>>, %arg6: memref<3x8x8xf32, #tpu.memory_space<vmem>>, %arg7: memref<8x1xf32, #tpu.memory_space<vmem>>, %arg8: memref<1x8x128xf32, #tpu.memory_space<vmem>>) attributes {dimension_semantics = [#tpu.dimension_semantics<parallel>], iteration_bounds = array<i64: 2>, scalar_prefetch = 0 : i64, scratch_operands = 0 : i64, tpu.core_type = #tpu.core_type<tc>, window_params = [{transform_indices = @transform_0, window_bounds = array<i64: 1, 8, 128>}, {pipeline_mode = #tpu.pipeline_mode<synchronous>, transform_indices = @transform_1, window_bounds = array<i64: 3, 8, 8>}, {pipeline_mode = #tpu.pipeline_mode<synchronous>, transform_indices = @transform_2, window_bounds = array<i64: 8, 1>}, {pipeline_mode = #tpu.pipeline_mode<synchronous>, transform_indices = @transform_3, window_bounds = array<i64: 3, 8, 8>}, {pipeline_mode = #tpu.pipeline_mode<synchronous>, transform_indices = @transform_4, window_bounds = array<i64: 8, 1>}, {pipeline_mode = #tpu.pipeline_mode<synchronous>, transform_indices = @transform_5, window_bounds = array<i64: 3, 8, 8>}, {pipeline_mode = #tpu.pipeline_mode<synchronous>, transform_indices = @transform_6, window_bounds = array<i64: 8, 1>}, {transform_indices = @transform_7, window_bounds = array<i64: 1, 8, 128>}]} {
    %c0 = arith.constant 0 : index
    %c0_0 = arith.constant 0 : index
    %c0_1 = arith.constant 0 : index
    %0 = vector.load %arg1[%c0, %c0_0, %c0_1] : memref<1x8x128xf32, #tpu.memory_space<vmem>>, vector<1x8x128xf32>
    %1 = vector.shape_cast %0 : vector<1x8x128xf32> to vector<8x128xf32>
    %2 = tpu.iota {dimensions = array<i32: 1>} : vector<8x128xi32>
    %c16_i32 = arith.constant 16 : i32
    %3 = vector.broadcast %c16_i32 : i32 to vector<8x128xi32>
    %4 = arith.cmpi slt, %2, %3 : vector<8x128xi32>
    %c0_2 = arith.constant 0 : index
    %c0_3 = arith.constant 0 : index
    %c0_4 = arith.constant 0 : index
    %5 = vector.load %arg2[%c0_2, %c0_3, %c0_4] : memref<3x8x8xf32, #tpu.memory_space<vmem>>, vector<1x8x8xf32>
    %6 = vector.shape_cast %5 : vector<1x8x8xf32> to vector<8x8xf32>
    %cst = arith.constant dense<0.000000e+00> : vector<8x128xf32>
    %7 = tpu.matmul %6, %1, %cst {dimension_numbers = #tpu.dot_dimension_numbers<[1], [0], [0], [1], [0, 0, 1, 1], [], []>} : vector<8x8xf32>, vector<8x128xf32>, vector<8x128xf32> -> vector<8x128xf32>
    %c1 = arith.constant 1 : index
    %c0_5 = arith.constant 0 : index
    %c0_6 = arith.constant 0 : index
    %8 = vector.load %arg2[%c1, %c0_5, %c0_6] : memref<3x8x8xf32, #tpu.memory_space<vmem>>, vector<1x8x8xf32>
    %9 = vector.shape_cast %8 : vector<1x8x8xf32> to vector<8x8xf32>
    %cst_7 = arith.constant dense<0.000000e+00> : vector<8x128xf32>
    %10 = tpu.matmul %9, %1, %cst_7 {dimension_numbers = #tpu.dot_dimension_numbers<[1], [0], [0], [1], [0, 0, 1, 1], [], []>} : vector<8x8xf32>, vector<8x128xf32>, vector<8x128xf32> -> vector<8x128xf32>
    %c2 = arith.constant 2 : index
    %c0_8 = arith.constant 0 : index
    %c0_9 = arith.constant 0 : index
    %11 = vector.load %arg2[%c2, %c0_8, %c0_9] : memref<3x8x8xf32, #tpu.memory_space<vmem>>, vector<1x8x8xf32>
    %12 = vector.shape_cast %11 : vector<1x8x8xf32> to vector<8x8xf32>
    %cst_10 = arith.constant dense<0.000000e+00> : vector<8x128xf32>
    %13 = tpu.matmul %12, %1, %cst_10 {dimension_numbers = #tpu.dot_dimension_numbers<[1], [0], [0], [1], [0, 0, 1, 1], [], []>} : vector<8x8xf32>, vector<8x128xf32>, vector<8x128xf32> -> vector<8x128xf32>
    %14 = tpu.iota {dimensions = array<i32: 1>} : vector<8x128xi32>
    %c1_i32 = arith.constant 1 : i32
    %15 = vector.broadcast %c1_i32 : i32 to vector<8x128xi32>
    %16 = arith.cmpi sge, %14, %15 : vector<8x128xi32>
    %c1_i32_11 = arith.constant 1 : i32
    %17 = tpu.dynamic_rotate %7 by %c1_i32_11 dim 1 : vector<8x128xf32>, i32 -> vector<8x128xf32>
    %cst_12 = arith.constant 0.000000e+00 : f32
    %18 = vector.broadcast %cst_12 : f32 to vector<8x128xf32>
    %19 = arith.select %16, %17, %18 : vector<8x128xi1>, vector<8x128xf32>
    %20 = arith.addf %10, %19 : vector<8x128xf32>
    %21 = tpu.iota {dimensions = array<i32: 1>} : vector<8x128xi32>
    %c127_i32 = arith.constant 127 : i32
    %22 = vector.broadcast %c127_i32 : i32 to vector<8x128xi32>
    %23 = arith.cmpi slt, %21, %22 : vector<8x128xi32>
    %c127_i32_13 = arith.constant 127 : i32
    %24 = tpu.dynamic_rotate %13 by %c127_i32_13 dim 1 : vector<8x128xf32>, i32 -> vector<8x128xf32>
    %cst_14 = arith.constant 0.000000e+00 : f32
    %25 = vector.broadcast %cst_14 : f32 to vector<8x128xf32>
    %26 = arith.select %23, %24, %25 : vector<8x128xi1>, vector<8x128xf32>
    %27 = arith.addf %20, %26 : vector<8x128xf32>
    %c0_15 = arith.constant 0 : index
    %c0_16 = arith.constant 0 : index
    %28 = vector.load %arg3[%c0_15, %c0_16] : memref<8x1xf32, #tpu.memory_space<vmem>>, vector<8x1xf32>
    %29 = vector.broadcast %28 : vector<8x1xf32> to vector<8x128xf32>
    %30 = arith.addf %27, %29 : vector<8x128xf32>
    %cst_17 = arith.constant 0.000000e+00 : f32
    %31 = vector.broadcast %cst_17 : f32 to vector<8x128xf32>
    %32 = arith.maximumf %30, %31 : vector<8x128xf32>
    %cst_18 = arith.constant dense<0.000000e+00> : vector<128xf32>
    %33 = vector.multi_reduction <add>, %32, %cst_18 [0] : vector<8x128xf32> to vector<128xf32>
    %34 = vector.shape_cast %33 : vector<128xf32> to vector<1x128xf32>
    %cst_19 = arith.constant 8.000000e+00 : f32
    %35 = vector.broadcast %cst_19 : f32 to vector<1x128xf32>
    %36 = arith.divf %34, %35 : vector<1x128xf32>
    %37 = vector.broadcast %36 : vector<1x128xf32> to vector<8x128xf32>
    %38 = arith.subf %32, %37 : vector<8x128xf32>
    %39 = arith.mulf %38, %38 : vector<8x128xf32>
    %cst_20 = arith.constant dense<0.000000e+00> : vector<128xf32>
    %40 = vector.multi_reduction <add>, %39, %cst_20 [0] : vector<8x128xf32> to vector<128xf32>
    %41 = vector.shape_cast %40 : vector<128xf32> to vector<1x128xf32>
    %cst_21 = arith.constant 8.000000e+00 : f32
    %42 = vector.broadcast %cst_21 : f32 to vector<1x128xf32>
    %43 = arith.divf %41, %42 : vector<1x128xf32>
    %cst_22 = arith.constant 9.99999974E-6 : f32
    %44 = vector.broadcast %cst_22 : f32 to vector<1x128xf32>
    %45 = arith.addf %43, %44 : vector<1x128xf32>
    %46 = math.rsqrt %45 : vector<1x128xf32>
    %47 = vector.broadcast %46 : vector<1x128xf32> to vector<8x128xf32>
    %48 = arith.mulf %38, %47 : vector<8x128xf32>
    %cst_23 = arith.constant 0.000000e+00 : f32
    %49 = vector.broadcast %cst_23 : f32 to vector<8x128xf32>
    %50 = arith.select %4, %48, %49 : vector<8x128xi1>, vector<8x128xf32>
    %c0_24 = arith.constant 0 : index
    %c0_25 = arith.constant 0 : index
    %c0_26 = arith.constant 0 : index
    %51 = vector.load %arg4[%c0_24, %c0_25, %c0_26] : memref<3x8x8xf32, #tpu.memory_space<vmem>>, vector<1x8x8xf32>
    %52 = vector.shape_cast %51 : vector<1x8x8xf32> to vector<8x8xf32>
    %cst_27 = arith.constant dense<0.000000e+00> : vector<8x128xf32>
    %53 = tpu.matmul %52, %50, %cst_27 {dimension_numbers = #tpu.dot_dimension_numbers<[1], [0], [0], [1], [0, 0, 1, 1], [], []>} : vector<8x8xf32>, vector<8x128xf32>, vector<8x128xf32> -> vector<8x128xf32>
    %c1_28 = arith.constant 1 : index
    %c0_29 = arith.constant 0 : index
    %c0_30 = arith.constant 0 : index
    %54 = vector.load %arg4[%c1_28, %c0_29, %c0_30] : memref<3x8x8xf32, #tpu.memory_space<vmem>>, vector<1x8x8xf32>
    %55 = vector.shape_cast %54 : vector<1x8x8xf32> to vector<8x8xf32>
    %cst_31 = arith.constant dense<0.000000e+00> : vector<8x128xf32>
    %56 = tpu.matmul %55, %50, %cst_31 {dimension_numbers = #tpu.dot_dimension_numbers<[1], [0], [0], [1], [0, 0, 1, 1], [], []>} : vector<8x8xf32>, vector<8x128xf32>, vector<8x128xf32> -> vector<8x128xf32>
    %c2_32 = arith.constant 2 : index
    %c0_33 = arith.constant 0 : index
    %c0_34 = arith.constant 0 : index
    %57 = vector.load %arg4[%c2_32, %c0_33, %c0_34] : memref<3x8x8xf32, #tpu.memory_space<vmem>>, vector<1x8x8xf32>
    %58 = vector.shape_cast %57 : vector<1x8x8xf32> to vector<8x8xf32>
    %cst_35 = arith.constant dense<0.000000e+00> : vector<8x128xf32>
    %59 = tpu.matmul %58, %50, %cst_35 {dimension_numbers = #tpu.dot_dimension_numbers<[1], [0], [0], [1], [0, 0, 1, 1], [], []>} : vector<8x8xf32>, vector<8x128xf32>, vector<8x128xf32> -> vector<8x128xf32>
    %60 = tpu.iota {dimensions = array<i32: 1>} : vector<8x128xi32>
    %c1_i32_36 = arith.constant 1 : i32
    %61 = vector.broadcast %c1_i32_36 : i32 to vector<8x128xi32>
    %62 = arith.cmpi sge, %60, %61 : vector<8x128xi32>
    %c1_i32_37 = arith.constant 1 : i32
    %63 = tpu.dynamic_rotate %53 by %c1_i32_37 dim 1 : vector<8x128xf32>, i32 -> vector<8x128xf32>
    %cst_38 = arith.constant 0.000000e+00 : f32
    %64 = vector.broadcast %cst_38 : f32 to vector<8x128xf32>
    %65 = arith.select %62, %63, %64 : vector<8x128xi1>, vector<8x128xf32>
    %66 = arith.addf %56, %65 : vector<8x128xf32>
    %67 = tpu.iota {dimensions = array<i32: 1>} : vector<8x128xi32>
    %c127_i32_39 = arith.constant 127 : i32
    %68 = vector.broadcast %c127_i32_39 : i32 to vector<8x128xi32>
    %69 = arith.cmpi slt, %67, %68 : vector<8x128xi32>
    %c127_i32_40 = arith.constant 127 : i32
    %70 = tpu.dynamic_rotate %59 by %c127_i32_40 dim 1 : vector<8x128xf32>, i32 -> vector<8x128xf32>
    %cst_41 = arith.constant 0.000000e+00 : f32
    %71 = vector.broadcast %cst_41 : f32 to vector<8x128xf32>
    %72 = arith.select %69, %70, %71 : vector<8x128xi1>, vector<8x128xf32>
    %73 = arith.addf %66, %72 : vector<8x128xf32>
    %c0_42 = arith.constant 0 : index
    %c0_43 = arith.constant 0 : index
    %74 = vector.load %arg5[%c0_42, %c0_43] : memref<8x1xf32, #tpu.memory_space<vmem>>, vector<8x1xf32>
    %75 = vector.broadcast %74 : vector<8x1xf32> to vector<8x128xf32>
    %76 = arith.addf %73, %75 : vector<8x128xf32>
    %cst_44 = arith.constant 0.000000e+00 : f32
    %77 = vector.broadcast %cst_44 : f32 to vector<8x128xf32>
    %78 = arith.select %4, %76, %77 : vector<8x128xi1>, vector<8x128xf32>
    %c0_45 = arith.constant 0 : index
    %c0_46 = arith.constant 0 : index
    %c0_47 = arith.constant 0 : index
    %79 = vector.load %arg6[%c0_45, %c0_46, %c0_47] : memref<3x8x8xf32, #tpu.memory_space<vmem>>, vector<1x8x8xf32>
    %80 = vector.shape_cast %79 : vector<1x8x8xf32> to vector<8x8xf32>
    %cst_48 = arith.constant dense<0.000000e+00> : vector<8x128xf32>
    %81 = tpu.matmul %80, %78, %cst_48 {dimension_numbers = #tpu.dot_dimension_numbers<[1], [0], [0], [1], [0, 0, 1, 1], [], []>} : vector<8x8xf32>, vector<8x128xf32>, vector<8x128xf32> -> vector<8x128xf32>
    %c1_49 = arith.constant 1 : index
    %c0_50 = arith.constant 0 : index
    %c0_51 = arith.constant 0 : index
    %82 = vector.load %arg6[%c1_49, %c0_50, %c0_51] : memref<3x8x8xf32, #tpu.memory_space<vmem>>, vector<1x8x8xf32>
    %83 = vector.shape_cast %82 : vector<1x8x8xf32> to vector<8x8xf32>
    %cst_52 = arith.constant dense<0.000000e+00> : vector<8x128xf32>
    %84 = tpu.matmul %83, %78, %cst_52 {dimension_numbers = #tpu.dot_dimension_numbers<[1], [0], [0], [1], [0, 0, 1, 1], [], []>} : vector<8x8xf32>, vector<8x128xf32>, vector<8x128xf32> -> vector<8x128xf32>
    %c2_53 = arith.constant 2 : index
    %c0_54 = arith.constant 0 : index
    %c0_55 = arith.constant 0 : index
    %85 = vector.load %arg6[%c2_53, %c0_54, %c0_55] : memref<3x8x8xf32, #tpu.memory_space<vmem>>, vector<1x8x8xf32>
    %86 = vector.shape_cast %85 : vector<1x8x8xf32> to vector<8x8xf32>
    %cst_56 = arith.constant dense<0.000000e+00> : vector<8x128xf32>
    %87 = tpu.matmul %86, %78, %cst_56 {dimension_numbers = #tpu.dot_dimension_numbers<[1], [0], [0], [1], [0, 0, 1, 1], [], []>} : vector<8x8xf32>, vector<8x128xf32>, vector<8x128xf32> -> vector<8x128xf32>
    %88 = tpu.iota {dimensions = array<i32: 1>} : vector<8x128xi32>
    %c2_i32 = arith.constant 2 : i32
    %89 = vector.broadcast %c2_i32 : i32 to vector<8x128xi32>
    %90 = arith.cmpi sge, %88, %89 : vector<8x128xi32>
    %c2_i32_57 = arith.constant 2 : i32
    %91 = tpu.dynamic_rotate %81 by %c2_i32_57 dim 1 : vector<8x128xf32>, i32 -> vector<8x128xf32>
    %cst_58 = arith.constant 0.000000e+00 : f32
    %92 = vector.broadcast %cst_58 : f32 to vector<8x128xf32>
    %93 = arith.select %90, %91, %92 : vector<8x128xi1>, vector<8x128xf32>
    %94 = arith.addf %84, %93 : vector<8x128xf32>
    %95 = tpu.iota {dimensions = array<i32: 1>} : vector<8x128xi32>
    %c126_i32 = arith.constant 126 : i32
    %96 = vector.broadcast %c126_i32 : i32 to vector<8x128xi32>
    %97 = arith.cmpi slt, %95, %96 : vector<8x128xi32>
    %c126_i32_59 = arith.constant 126 : i32
    %98 = tpu.dynamic_rotate %87 by %c126_i32_59 dim 1 : vector<8x128xf32>, i32 -> vector<8x128xf32>
    %cst_60 = arith.constant 0.000000e+00 : f32
    %99 = vector.broadcast %cst_60 : f32 to vector<8x128xf32>
    %100 = arith.select %97, %98, %99 : vector<8x128xi1>, vector<8x128xf32>
    %101 = arith.addf %94, %100 : vector<8x128xf32>
    %c0_61 = arith.constant 0 : index
    %c0_62 = arith.constant 0 : index
    %102 = vector.load %arg7[%c0_61, %c0_62] : memref<8x1xf32, #tpu.memory_space<vmem>>, vector<8x1xf32>
    %103 = vector.broadcast %102 : vector<8x1xf32> to vector<8x128xf32>
    %104 = arith.addf %101, %103 : vector<8x128xf32>
    %cst_63 = arith.constant 0.000000e+00 : f32
    %105 = vector.broadcast %cst_63 : f32 to vector<8x128xf32>
    %106 = arith.maximumf %104, %105 : vector<8x128xf32>
    %cst_64 = arith.constant dense<0.000000e+00> : vector<128xf32>
    %107 = vector.multi_reduction <add>, %106, %cst_64 [0] : vector<8x128xf32> to vector<128xf32>
    %108 = vector.shape_cast %107 : vector<128xf32> to vector<1x128xf32>
    %cst_65 = arith.constant 8.000000e+00 : f32
    %109 = vector.broadcast %cst_65 : f32 to vector<1x128xf32>
    %110 = arith.divf %108, %109 : vector<1x128xf32>
    %111 = vector.broadcast %110 : vector<1x128xf32> to vector<8x128xf32>
    %112 = arith.subf %106, %111 : vector<8x128xf32>
    %113 = arith.mulf %112, %112 : vector<8x128xf32>
    %cst_66 = arith.constant dense<0.000000e+00> : vector<128xf32>
    %114 = vector.multi_reduction <add>, %113, %cst_66 [0] : vector<8x128xf32> to vector<128xf32>
    %115 = vector.shape_cast %114 : vector<128xf32> to vector<1x128xf32>
    %cst_67 = arith.constant 8.000000e+00 : f32
    %116 = vector.broadcast %cst_67 : f32 to vector<1x128xf32>
    %117 = arith.divf %115, %116 : vector<1x128xf32>
    %cst_68 = arith.constant 9.99999974E-6 : f32
    %118 = vector.broadcast %cst_68 : f32 to vector<1x128xf32>
    %119 = arith.addf %117, %118 : vector<1x128xf32>
    %120 = math.rsqrt %119 : vector<1x128xf32>
    %121 = vector.broadcast %120 : vector<1x128xf32> to vector<8x128xf32>
    %122 = arith.mulf %112, %121 : vector<8x128xf32>
    %cst_69 = arith.constant 0.000000e+00 : f32
    %123 = vector.broadcast %cst_69 : f32 to vector<8x128xf32>
    %124 = arith.select %4, %122, %123 : vector<8x128xi1>, vector<8x128xf32>
    %c0_70 = arith.constant 0 : index
    %c0_71 = arith.constant 0 : index
    %c0_72 = arith.constant 0 : index
    %125 = vector.load %arg8[%c0_70, %c0_71, %c0_72] : memref<1x8x128xf32, #tpu.memory_space<vmem>>, vector<1x8x128xf32>
    %126 = vector.shape_cast %125 : vector<1x8x128xf32> to vector<8x128xf32>
    %127 = vector.shape_cast %124 : vector<8x128xf32> to vector<1x8x128xf32>
    tpu.vector_store %arg8[%c0_70, %c0_71, %c0_72], %127 {strides = array<i32>} : memref<1x8x128xf32, #tpu.memory_space<vmem>>, vector<1x8x128xf32>,
    return
  }
  func.func @transform_0(%arg0: i32) -> (i32, i32, i32) {
    %c0_i32 = arith.constant 0 : i32
    %c0_i32_0 = arith.constant 0 : i32
    %c0_i32_1 = arith.constant 0 : i32
    return %arg0, %c0_i32, %c0_i32_0 : i32, i32, i32
  }
  func.func @transform_1(%arg0: i32) -> (i32, i32, i32) {
    %c0_i32 = arith.constant 0 : i32
    %c0_i32_0 = arith.constant 0 : i32
    %c0_i32_1 = arith.constant 0 : i32
    %c0_i32_2 = arith.constant 0 : i32
    return %c0_i32, %c0_i32_0, %c0_i32_1 : i32, i32, i32
  }
  func.func @transform_2(%arg0: i32) -> (i32, i32) {
    %c0_i32 = arith.constant 0 : i32
    %c0_i32_0 = arith.constant 0 : i32
    %c0_i32_1 = arith.constant 0 : i32
    return %c0_i32, %c0_i32_0 : i32, i32
  }
  func.func @transform_3(%arg0: i32) -> (i32, i32, i32) {
    %c0_i32 = arith.constant 0 : i32
    %c0_i32_0 = arith.constant 0 : i32
    %c0_i32_1 = arith.constant 0 : i32
    %c0_i32_2 = arith.constant 0 : i32
    return %c0_i32, %c0_i32_0, %c0_i32_1 : i32, i32, i32
  }
  func.func @transform_4(%arg0: i32) -> (i32, i32) {
    %c0_i32 = arith.constant 0 : i32
    %c0_i32_0 = arith.constant 0 : i32
    %c0_i32_1 = arith.constant 0 : i32
    return %c0_i32, %c0_i32_0 : i32, i32
  }
  func.func @transform_5(%arg0: i32) -> (i32, i32, i32) {
    %c0_i32 = arith.constant 0 : i32
    %c0_i32_0 = arith.constant 0 : i32
    %c0_i32_1 = arith.constant 0 : i32
    %c0_i32_2 = arith.constant 0 : i32
    return %c0_i32, %c0_i32_0, %c0_i32_1 : i32, i32, i32
  }
  func.func @transform_6(%arg0: i32) -> (i32, i32) {
    %c0_i32 = arith.constant 0 : i32
    %c0_i32_0 = arith.constant 0 : i32
    %c0_i32_1 = arith.constant 0 : i32
    return %c0_i32, %c0_i32_0 : i32, i32
  }
  func.func @transform_7(%arg0: i32) -> (i32, i32, i32) {
    %c0_i32 = arith.constant 0 : i32
    %c0_i32_0 = arith.constant 0 : i32
    %c0_i32_1 = arith.constant 0 : i32
    return %arg0, %c0_i32, %c0_i32_0 : i32, i32, i32
  }
}

module attributes {stable_mosaic.version = 11 : i64} {
  func.func @_idcnn_block_kernel(%arg0: i32, %arg1: memref<1x8x128xf32, #tpu.memory_space<vmem>>, %arg2: memref<3x8x8xf32, #tpu.memory_space<vmem>>, %arg3: memref<8x1xf32, #tpu.memory_space<vmem>>, %arg4: memref<3x8x8xf32, #tpu.memory_space<vmem>>, %arg5: memref<8x1xf32, #tpu.memory_space<vmem>>, %arg6: memref<3x8x8xf32, #tpu.memory_space<vmem>>, %arg7: memref<8x1xf32, #tpu.memory_space<vmem>>, %arg8: memref<1x8x128xf32, #tpu.memory_space<vmem>>) attributes {dimension_semantics = [#tpu.dimension_semantics<parallel>], iteration_bounds = array<i64: 2>, scalar_prefetch = 0 : i64, scratch_operands = 0 : i64, tpu.core_type = #tpu.core_type<tc>, window_params = [{transform_indices = @transform_0, window_bounds = array<i64: 1, 8, 128>}, {pipeline_mode = #tpu.pipeline_mode<synchronous>, transform_indices = @transform_1, window_bounds = array<i64: 3, 8, 8>}, {pipeline_mode = #tpu.pipeline_mode<synchronous>, transform_indices = @transform_2, window_bounds = array<i64: 8, 1>}, {pipeline_mode = #tpu.pipeline_mode<synchronous>, transform_indices = @transform_3, window_bounds = array<i64: 3, 8, 8>}, {pipeline_mode = #tpu.pipeline_mode<synchronous>, transform_indices = @transform_4, window_bounds = array<i64: 8, 1>}, {pipeline_mode = #tpu.pipeline_mode<synchronous>, transform_indices = @transform_5, window_bounds = array<i64: 3, 8, 8>}, {pipeline_mode = #tpu.pipeline_mode<synchronous>, transform_indices = @transform_6, window_bounds = array<i64: 8, 1>}, {transform_indices = @transform_7, window_bounds = array<i64: 1, 8, 128>}]} {
    %c0 = arith.constant 0 : index
    %c0_0 = arith.constant 0 : index
    %c0_1 = arith.constant 0 : index
    %0 = vector.load %arg1[%c0, %c0_0, %c0_1] : memref<1x8x128xf32, #tpu.memory_space<vmem>>, vector<1x8x128xf32>
    %1 = vector.shape_cast %0 : vector<1x8x128xf32> to vector<8x128xf32>
    %2 = tpu.iota {dimensions = array<i32: 1>} : vector<8x128xi32>
    %c16_i32 = arith.constant 16 : i32
    %3 = vector.broadcast %c16_i32 : i32 to vector<8x128xi32>
    %4 = arith.cmpi slt, %2, %3 : vector<8x128xi32>
    %c0_2 = arith.constant 0 : index
    %c0_3 = arith.constant 0 : index
    %c0_4 = arith.constant 0 : index
    %5 = vector.load %arg2[%c0_2, %c0_3, %c0_4] : memref<3x8x8xf32, #tpu.memory_space<vmem>>, vector<1x8x8xf32>
    %6 = vector.shape_cast %5 : vector<1x8x8xf32> to vector<8x8xf32>
    %cst = arith.constant dense<0.000000e+00> : vector<8x128xf32>
    %7 = tpu.matmul %6, %1, %cst {dimension_numbers = #tpu.dot_dimension_numbers<[1], [0], [0], [1], [0, 0, 1, 1], [], []>} : vector<8x8xf32>, vector<8x128xf32>, vector<8x128xf32> -> vector<8x128xf32>
    %c1 = arith.constant 1 : index
    %c0_5 = arith.constant 0 : index
    %c0_6 = arith.constant 0 : index
    %8 = vector.load %arg2[%c1, %c0_5, %c0_6] : memref<3x8x8xf32, #tpu.memory_space<vmem>>, vector<1x8x8xf32>
    %9 = vector.shape_cast %8 : vector<1x8x8xf32> to vector<8x8xf32>
    %cst_7 = arith.constant dense<0.000000e+00> : vector<8x128xf32>
    %10 = tpu.matmul %9, %1, %cst_7 {dimension_numbers = #tpu.dot_dimension_numbers<[1], [0], [0], [1], [0, 0, 1, 1], [], []>} : vector<8x8xf32>, vector<8x128xf32>, vector<8x128xf32> -> vector<8x128xf32>
    %c2 = arith.constant 2 : index
    %c0_8 = arith.constant 0 : index
    %c0_9 = arith.constant 0 : index
    %11 = vector.load %arg2[%c2, %c0_8, %c0_9] : memref<3x8x8xf32, #tpu.memory_space<vmem>>, vector<1x8x8xf32>
    %12 = vector.shape_cast %11 : vector<1x8x8xf32> to vector<8x8xf32>
    %cst_10 = arith.constant dense<0.000000e+00> : vector<8x128xf32>
    %13 = tpu.matmul %12, %1, %cst_10 {dimension_numbers = #tpu.dot_dimension_numbers<[1], [0], [0], [1], [0, 0, 1, 1], [], []>} : vector<8x8xf32>, vector<8x128xf32>, vector<8x128xf32> -> vector<8x128xf32>
    %14 = tpu.iota {dimensions = array<i32: 1>} : vector<8x128xi32>
    %c1_i32 = arith.constant 1 : i32
    %15 = vector.broadcast %c1_i32 : i32 to vector<8x128xi32>
    %16 = arith.cmpi sge, %14, %15 : vector<8x128xi32>
    %c1_i32_11 = arith.constant 1 : i32
    %17 = tpu.dynamic_rotate %7 by %c1_i32_11 dim 1 : vector<8x128xf32>, i32 -> vector<8x128xf32>
    %cst_12 = arith.constant 0.000000e+00 : f32
    %18 = vector.broadcast %cst_12 : f32 to vector<8x128xf32>
    %19 = arith.select %16, %17, %18 : vector<8x128xi1>, vector<8x128xf32>
    %20 = arith.addf %10, %19 : vector<8x128xf32>
    %21 = tpu.iota {dimensions = array<i32: 1>} : vector<8x128xi32>
    %c127_i32 = arith.constant 127 : i32
    %22 = vector.broadcast %c127_i32 : i32 to vector<8x128xi32>
    %23 = arith.cmpi slt, %21, %22 : vector<8x128xi32>
    %c127_i32_13 = arith.constant 127 : i32
    %24 = tpu.dynamic_rotate %13 by %c127_i32_13 dim 1 : vector<8x128xf32>, i32 -> vector<8x128xf32>
    %cst_14 = arith.constant 0.000000e+00 : f32
    %25 = vector.broadcast %cst_14 : f32 to vector<8x128xf32>
    %26 = arith.select %23, %24, %25 : vector<8x128xi1>, vector<8x128xf32>
    %27 = arith.addf %20, %26 : vector<8x128xf32>
    %c0_15 = arith.constant 0 : index
    %c0_16 = arith.constant 0 : index
    %28 = vector.load %arg3[%c0_15, %c0_16] : memref<8x1xf32, #tpu.memory_space<vmem>>, vector<8x1xf32>
    %29 = vector.broadcast %28 : vector<8x1xf32> to vector<8x128xf32>
    %30 = arith.addf %27, %29 : vector<8x128xf32>
    %cst_17 = arith.constant 0.000000e+00 : f32
    %31 = vector.broadcast %cst_17 : f32 to vector<8x128xf32>
    %32 = arith.maximumf %30, %31 : vector<8x128xf32>
    %cst_18 = arith.constant dense<0.000000e+00> : vector<128xf32>
    %33 = vector.multi_reduction <add>, %32, %cst_18 [0] : vector<8x128xf32> to vector<128xf32>
    %34 = vector.shape_cast %33 : vector<128xf32> to vector<1x128xf32>
    %cst_19 = arith.constant 8.000000e+00 : f32
    %35 = vector.broadcast %cst_19 : f32 to vector<1x128xf32>
    %36 = arith.divf %34, %35 : vector<1x128xf32>
    %37 = vector.broadcast %36 : vector<1x128xf32> to vector<8x128xf32>
    %38 = arith.subf %32, %37 : vector<8x128xf32>
    %39 = arith.mulf %38, %38 : vector<8x128xf32>
    %cst_20 = arith.constant dense<0.000000e+00> : vector<128xf32>
    %40 = vector.multi_reduction <add>, %39, %cst_20 [0] : vector<8x128xf32> to vector<128xf32>
    %41 = vector.shape_cast %40 : vector<128xf32> to vector<1x128xf32>
    %cst_21 = arith.constant 8.000000e+00 : f32
    %42 = vector.broadcast %cst_21 : f32 to vector<1x128xf32>
    %43 = arith.divf %41, %42 : vector<1x128xf32>
    %cst_22 = arith.constant 9.99999974E-6 : f32
    %44 = vector.broadcast %cst_22 : f32 to vector<1x128xf32>
    %45 = arith.addf %43, %44 : vector<1x128xf32>
    %46 = math.rsqrt %45 : vector<1x128xf32>
    %47 = vector.broadcast %46 : vector<1x128xf32> to vector<8x128xf32>
    %48 = arith.mulf %38, %47 : vector<8x128xf32>
    %cst_23 = arith.constant 0.000000e+00 : f32
    %49 = vector.broadcast %cst_23 : f32 to vector<8x128xf32>
    %50 = arith.select %4, %48, %49 : vector<8x128xi1>, vector<8x128xf32>
    %c0_24 = arith.constant 0 : index
    %c0_25 = arith.constant 0 : index
    %c0_26 = arith.constant 0 : index
    %51 = vector.load %arg4[%c0_24, %c0_25, %c0_26] : memref<3x8x8xf32, #tpu.memory_space<vmem>>, vector<1x8x8xf32>
    %52 = vector.shape_cast %51 : vector<1x8x8xf32> to vector<8x8xf32>
    %cst_27 = arith.constant dense<0.000000e+00> : vector<8x128xf32>
    %53 = tpu.matmul %52, %50, %cst_27 {dimension_numbers = #tpu.dot_dimension_numbers<[1], [0], [0], [1], [0, 0, 1, 1], [], []>} : vector<8x8xf32>, vector<8x128xf32>, vector<8x128xf32> -> vector<8x128xf32>
    %c1_28 = arith.constant 1 : index
    %c0_29 = arith.constant 0 : index
    %c0_30 = arith.constant 0 : index
    %54 = vector.load %arg4[%c1_28, %c0_29, %c0_30] : memref<3x8x8xf32, #tpu.memory_space<vmem>>, vector<1x8x8xf32>
    %55 = vector.shape_cast %54 : vector<1x8x8xf32> to vector<8x8xf32>
    %cst_31 = arith.constant dense<0.000000e+00> : vector<8x128xf32>
    %56 = tpu.matmul %55, %50, %cst_31 {dimension_numbers = #tpu.dot_dimension_numbers<[1], [0], [0], [1], [0, 0, 1, 1], [], []>} : vector<8x8xf32>, vector<8x128xf32>, vector<8x128xf32> -> vector<8x128xf32>
    %c2_32 = arith.constant 2 : index
    %c0_33 = arith.constant 0 : index
    %c0_34 = arith.constant 0 : index
    %57 = vector.load %arg4[%c2_32, %c0_33, %c0_34] : memref<3x8x8xf32, #tpu.memory_space<vmem>>, vector<1x8x8xf32>
    %58 = vector.shape_cast %57 : vector<1x8x8xf32> to vector<8x8xf32>
    %cst_35 = arith.constant dense<0.000000e+00> : vector<8x128xf32>
    %59 = tpu.matmul %58, %50, %cst_35 {dimension_numbers = #tpu.dot_dimension_numbers<[1], [0], [0], [1], [0, 0, 1, 1], [], []>} : vector<8x8xf32>, vector<8x128xf32>, vector<8x128xf32> -> vector<8x128xf32>
    %60 = tpu.iota {dimensions = array<i32: 1>} : vector<8x128xi32>
    %c1_i32_36 = arith.constant 1 : i32
    %61 = vector.broadcast %c1_i32_36 : i32 to vector<8x128xi32>
    %62 = arith.cmpi sge, %60, %61 : vector<8x128xi32>
    %c1_i32_37 = arith.constant 1 : i32
    %63 = tpu.dynamic_rotate %53 by %c1_i32_37 dim 1 : vector<8x128xf32>, i32 -> vector<8x128xf32>
    %cst_38 = arith.constant 0.000000e+00 : f32
    %64 = vector.broadcast %cst_38 : f32 to vector<8x128xf32>
    %65 = arith.select %62, %63, %64 : vector<8x128xi1>, vector<8x128xf32>
    %66 = arith.addf %56, %65 : vector<8x128xf32>
    %67 = tpu.iota {dimensions = array<i32: 1>} : vector<8x128xi32>
    %c127_i32_39 = arith.constant 127 : i32
    %68 = vector.broadcast %c127_i32_39 : i32 to vector<8x128xi32>
    %69 = arith.cmpi slt, %67, %68 : vector<8x128xi32>
    %c127_i32_40 = arith.constant 127 : i32
    %70 = tpu.dynamic_rotate %59 by %c127_i32_40 dim 1 : vector<8x128xf32>, i32 -> vector<8x128xf32>
    %cst_41 = arith.constant 0.000000e+00 : f32
    %71 = vector.broadcast %cst_41 : f32 to vector<8x128xf32>
    %72 = arith.select %69, %70, %71 : vector<8x128xi1>, vector<8x128xf32>
    %73 = arith.addf %66, %72 : vector<8x128xf32>
    %c0_42 = arith.constant 0 : index
    %c0_43 = arith.constant 0 : index
    %74 = vector.load %arg5[%c0_42, %c0_43] : memref<8x1xf32, #tpu.memory_space<vmem>>, vector<8x1xf32>
    %75 = vector.broadcast %74 : vector<8x1xf32> to vector<8x128xf32>
    %76 = arith.addf %73, %75 : vector<8x128xf32>
    %cst_44 = arith.constant 0.000000e+00 : f32
    %77 = vector.broadcast %cst_44 : f32 to vector<8x128xf32>
    %78 = arith.select %4, %76, %77 : vector<8x128xi1>, vector<8x128xf32>
    %c0_45 = arith.constant 0 : index
    %c0_46 = arith.constant 0 : index
    %c0_47 = arith.constant 0 : index
    %79 = vector.load %arg6[%c0_45, %c0_46, %c0_47] : memref<3x8x8xf32, #tpu.memory_space<vmem>>, vector<1x8x8xf32>
    %80 = vector.shape_cast %79 : vector<1x8x8xf32> to vector<8x8xf32>
    %cst_48 = arith.constant dense<0.000000e+00> : vector<8x128xf32>
    %81 = tpu.matmul %80, %78, %cst_48 {dimension_numbers = #tpu.dot_dimension_numbers<[1], [0], [0], [1], [0, 0, 1, 1], [], []>} : vector<8x8xf32>, vector<8x128xf32>, vector<8x128xf32> -> vector<8x128xf32>
    %c1_49 = arith.constant 1 : index
    %c0_50 = arith.constant 0 : index
    %c0_51 = arith.constant 0 : index
    %82 = vector.load %arg6[%c1_49, %c0_50, %c0_51] : memref<3x8x8xf32, #tpu.memory_space<vmem>>, vector<1x8x8xf32>
    %83 = vector.shape_cast %82 : vector<1x8x8xf32> to vector<8x8xf32>
    %cst_52 = arith.constant dense<0.000000e+00> : vector<8x128xf32>
    %84 = tpu.matmul %83, %78, %cst_52 {dimension_numbers = #tpu.dot_dimension_numbers<[1], [0], [0], [1], [0, 0, 1, 1], [], []>} : vector<8x8xf32>, vector<8x128xf32>, vector<8x128xf32> -> vector<8x128xf32>
    %c2_53 = arith.constant 2 : index
    %c0_54 = arith.constant 0 : index
    %c0_55 = arith.constant 0 : index
    %85 = vector.load %arg6[%c2_53, %c0_54, %c0_55] : memref<3x8x8xf32, #tpu.memory_space<vmem>>, vector<1x8x8xf32>
    %86 = vector.shape_cast %85 : vector<1x8x8xf32> to vector<8x8xf32>
    %cst_56 = arith.constant dense<0.000000e+00> : vector<8x128xf32>
    %87 = tpu.matmul %86, %78, %cst_56 {dimension_numbers = #tpu.dot_dimension_numbers<[1], [0], [0], [1], [0, 0, 1, 1], [], []>} : vector<8x8xf32>, vector<8x128xf32>, vector<8x128xf32> -> vector<8x128xf32>
    %88 = tpu.iota {dimensions = array<i32: 1>} : vector<8x128xi32>
    %c2_i32 = arith.constant 2 : i32
    %89 = vector.broadcast %c2_i32 : i32 to vector<8x128xi32>
    %90 = arith.cmpi sge, %88, %89 : vector<8x128xi32>
    %c2_i32_57 = arith.constant 2 : i32
    %91 = tpu.dynamic_rotate %81 by %c2_i32_57 dim 1 : vector<8x128xf32>, i32 -> vector<8x128xf32>
    %cst_58 = arith.constant 0.000000e+00 : f32
    %92 = vector.broadcast %cst_58 : f32 to vector<8x128xf32>
    %93 = arith.select %90, %91, %92 : vector<8x128xi1>, vector<8x128xf32>
    %94 = arith.addf %84, %93 : vector<8x128xf32>
    %95 = tpu.iota {dimensions = array<i32: 1>} : vector<8x128xi32>
    %c126_i32 = arith.constant 126 : i32
    %96 = vector.broadcast %c126_i32 : i32 to vector<8x128xi32>
    %97 = arith.cmpi slt, %95, %96 : vector<8x128xi32>
    %c126_i32_59 = arith.constant 126 : i32
    %98 = tpu.dynamic_rotate %87 by %c126_i32_59 dim 1 : vector<8x128xf32>, i32 -> vector<8x128xf32>
    %cst_60 = arith.constant 0.000000e+00 : f32
    %99 = vector.broadcast %cst_60 : f32 to vector<8x128xf32>
    %100 = arith.select %97, %98, %99 : vector<8x128xi1>, vector<8x128xf32>
    %101 = arith.addf %94, %100 : vector<8x128xf32>
    %c0_61 = arith.constant 0 : index
    %c0_62 = arith.constant 0 : index
    %102 = vector.load %arg7[%c0_61, %c0_62] : memref<8x1xf32, #tpu.memory_space<vmem>>, vector<8x1xf32>
    %103 = vector.broadcast %102 : vector<8x1xf32> to vector<8x128xf32>
    %104 = arith.addf %101, %103 : vector<8x128xf32>
    %cst_63 = arith.constant 0.000000e+00 : f32
    %105 = vector.broadcast %cst_63 : f32 to vector<8x128xf32>
    %106 = arith.select %4, %104, %105 : vector<8x128xi1>, vector<8x128xf32>
    %c0_64 = arith.constant 0 : index
    %c0_65 = arith.constant 0 : index
    %c0_66 = arith.constant 0 : index
    %107 = vector.load %arg8[%c0_64, %c0_65, %c0_66] : memref<1x8x128xf32, #tpu.memory_space<vmem>>, vector<1x8x128xf32>
    %108 = vector.shape_cast %107 : vector<1x8x128xf32> to vector<8x128xf32>
    %109 = vector.shape_cast %106 : vector<8x128xf32> to vector<1x8x128xf32>
    tpu.vector_store %arg8[%c0_64, %c0_65, %c0_66], %109 {strides = array<i32>} : memref<1x8x128xf32, #tpu.memory_space<vmem>>, vector<1x8x128xf32>,
    return
  }
  func.func @transform_0(%arg0: i32) -> (i32, i32, i32) {
    %c0_i32 = arith.constant 0 : i32
    %c0_i32_0 = arith.constant 0 : i32
    %c0_i32_1 = arith.constant 0 : i32
    return %arg0, %c0_i32, %c0_i32_0 : i32, i32, i32
  }
  func.func @transform_1(%arg0: i32) -> (i32, i32, i32) {
    %c0_i32 = arith.constant 0 : i32
    %c0_i32_0 = arith.constant 0 : i32
    %c0_i32_1 = arith.constant 0 : i32
    %c0_i32_2 = arith.constant 0 : i32
    return %c0_i32, %c0_i32_0, %c0_i32_1 : i32, i32, i32
  }
  func.func @transform_2(%arg0: i32) -> (i32, i32) {
    %c0_i32 = arith.constant 0 : i32
    %c0_i32_0 = arith.constant 0 : i32
    %c0_i32_1 = arith.constant 0 : i32
    return %c0_i32, %c0_i32_0 : i32, i32
  }
  func.func @transform_3(%arg0: i32) -> (i32, i32, i32) {
    %c0_i32 = arith.constant 0 : i32
    %c0_i32_0 = arith.constant 0 : i32
    %c0_i32_1 = arith.constant 0 : i32
    %c0_i32_2 = arith.constant 0 : i32
    return %c0_i32, %c0_i32_0, %c0_i32_1 : i32, i32, i32
  }
  func.func @transform_4(%arg0: i32) -> (i32, i32) {
    %c0_i32 = arith.constant 0 : i32
    %c0_i32_0 = arith.constant 0 : i32
    %c0_i32_1 = arith.constant 0 : i32
    return %c0_i32, %c0_i32_0 : i32, i32
  }
  func.func @transform_5(%arg0: i32) -> (i32, i32, i32) {
    %c0_i32 = arith.constant 0 : i32
    %c0_i32_0 = arith.constant 0 : i32
    %c0_i32_1 = arith.constant 0 : i32
    %c0_i32_2 = arith.constant 0 : i32
    return %c0_i32, %c0_i32_0, %c0_i32_1 : i32, i32, i32
  }
  func.func @transform_6(%arg0: i32) -> (i32, i32) {
    %c0_i32 = arith.constant 0 : i32
    %c0_i32_0 = arith.constant 0 : i32
    %c0_i32_1 = arith.constant 0 : i32
    return %c0_i32, %c0_i32_0 : i32, i32
  }
  func.func @transform_7(%arg0: i32) -> (i32, i32, i32) {
    %c0_i32 = arith.constant 0 : i32
    %c0_i32_0 = arith.constant 0 : i32
    %c0_i32_1 = arith.constant 0 : i32
    return %arg0, %c0_i32, %c0_i32_0 : i32, i32, i32
  }
}

</mosaic_0001>

<llo_original>
// kernel: idcnn_forward.5
$region0: #{idcnn_forward.5}
  #allocation0 [shape = 'u32[]', space=smem, size = 0x4, offset = 0x4, fixed_abs, tag = 'smem constant byte address 0x4 - core index']
  #allocation1 [shape = 'u32[144,128]{1,0:T(1,128)}', space=vmem, size = 0x12000, scoped, tag = 'internal scratch']
  %s0 = inlined_call_operand.vmem [shape: f32[2,8,128], index: 0, kind: input, shape index: {}]
  %s1 = inlined_call_operand.vmem [shape: f32[3,8,8], index: 1, kind: input, shape index: {}]
  %s2 = inlined_call_operand.vmem [shape: f32[8,1], index: 2, kind: input, shape index: {}]
  %s3 = inlined_call_operand.vmem [shape: f32[3,8,8], index: 3, kind: input, shape index: {}]
  %s4 = inlined_call_operand.vmem [shape: f32[8,1], index: 4, kind: input, shape index: {}]
  %s5 = inlined_call_operand.vmem [shape: f32[3,8,8], index: 5, kind: input, shape index: {}]
  %s6 = inlined_call_operand.vmem [shape: f32[8,1], index: 6, kind: input, shape index: {}]
  %s7 = inlined_call_operand.vmem [shape: f32[2,8,128], index: 7, kind: output, shape index: {}]
  %s8 = sld [smem:[#allocation0]]
  $region61: #{idcnn_forward.5} parent=0
    _
  %s10 = ssub.s32 1, %s8
  %s11 = scalar_select 0, %s10, %s8
  loop: start=0, step=1, limit=4
  $region2: #{idcnn_forward.5} parent=0 // loop_pre_header
    _
  $region3: #{idcnn_forward.5} parent=0 // loop_header
    %s13 = sphi 0, %s17
    %p14 = scmp.ge.s32.totalorder %s13, 4
    %s23 = sphi 0, %s25
    %s26 = sphi 0, %s23
    %s27 = sphi 0, %s26
    %s43 = sphi 0, %s27
    %s47 = sphi 0, %s47
    %s49 = sphi 0, %s47
    %s50 = sphi 0, %s49
    %s64 = sphi 0, %s50
    %s68 = sphi 0, %s68
    %s70 = sphi 0, %s68
    %s71 = sphi 0, %s70
    %s85 = sphi 0, %s71
    %s89 = sphi 0, %s89
    %s91 = sphi 0, %s89
    %s92 = sphi 0, %s91
    %s106 = sphi 0, %s92
    %s110 = sphi 0, %s110
    %s112 = sphi 0, %s110
    %s113 = sphi 0, %s112
    %s127 = sphi 0, %s113
    %s131 = sphi 0, %s131
    %s133 = sphi 0, %s131
    %s134 = sphi 0, %s133
    %s148 = sphi 0, %s134
    %s152 = sphi 0, %s152
    %s154 = sphi 0, %s152
    %s155 = sphi 0, %s154
    %s169 = sphi 0, %s155
    %s175 = sphi 0, %s177
    %s178 = sphi 0, %s175
    %s179 = sphi 0, %s178
    %s195 = sphi 0, %s179
  $region4: #{idcnn_forward.5} parent=0 // loop_header_branch
    %16 = sbr.rel (%p14) target = $region8
  $region5: #{idcnn_forward.5} parent=0 // loop_body
    %s18 = ssub.s32 %s13, 1
    %s19 = ssub.s32 %s13, 2
    %s20 = sadd.s32 %s13, 1
    %s21 = ssub.s32 %s13, %s20
    %p22 = scmp.eq.s32.totalorder %s21, 0
    %s24 = sadd.s32 %s23, 1
    %s25 = scalar_select %p22, %s23, %s24
    %p28 = pneg %p22
    %p29 = scmp.eq.s32.totalorder %s13, 1
    %p30 = por %p28, %p29
    %p31 = scmp.ne.s32.totalorder %s23, %s26
    %p32 = scmp.eq.s32.totalorder %s13, 0
    %p33 = por %p31, %p32
    %p34 = scmp.ne.s32.totalorder %s23, %s26
    %p35 = scmp.eq.s32.totalorder %s18, 1
    %p36 = por %p34, %p35
    %p37 = scmp.ne.s32.totalorder %s26, %s27
    %p38 = scmp.eq.s32.totalorder %s18, 0
    %p39 = por %p37, %p38
    %p40 = scmp.ne.s32.totalorder %s26, %s27
    %p41 = scmp.eq.s32.totalorder %s19, 1
    %p42 = por %p40, %p41
    %p44 = scmp.ne.s32.totalorder %s27, %s43
    %p45 = scmp.eq.s32.totalorder %s19, 0
    %p46 = por %p44, %p45
    %s48 = sadd.s32 %s47, 1
    %p51 = scmp.eq.s32.totalorder %s13, 1
    %p52 = scmp.ne.s32.totalorder %s47, %s49
    %p53 = scmp.eq.s32.totalorder %s13, 0
    %p54 = por %p52, %p53
    %p55 = scmp.ne.s32.totalorder %s47, %s49
    %p56 = scmp.eq.s32.totalorder %s18, 1
    %p57 = por %p55, %p56
    %p58 = scmp.ne.s32.totalorder %s49, %s50
    %p59 = scmp.eq.s32.totalorder %s18, 0
    %p60 = por %p58, %p59
    %p61 = scmp.ne.s32.totalorder %s49, %s50
    %p62 = scmp.eq.s32.totalorder %s19, 1
    %p63 = por %p61, %p62
    %p65 = scmp.ne.s32.totalorder %s50, %s64
    %p66 = scmp.eq.s32.totalorder %s19, 0
    %p67 = por %p65, %p66
    %s69 = sadd.s32 %s68, 1
    %p72 = scmp.eq.s32.totalorder %s13, 1
    %p73 = scmp.ne.s32.totalorder %s68, %s70
    %p74 = scmp.eq.s32.totalorder %s13, 0
    %p75 = por %p73, %p74
    %p76 = scmp.ne.s32.totalorder %s68, %s70
    %p77 = scmp.eq.s32.totalorder %s18, 1
    %p78 = por %p76, %p77
    %p79 = scmp.ne.s32.totalorder %s70, %s71
    %p80 = scmp.eq.s32.totalorder %s18, 0
    %p81 = por %p79, %p80
    %p82 = scmp.ne.s32.totalorder %s70, %s71
    %p83 = scmp.eq.s32.totalorder %s19, 1
    %p84 = por %p82, %p83
    %p86 = scmp.ne.s32.totalorder %s71, %s85
    %p87 = scmp.eq.s32.totalorder %s19, 0
    %p88 = por %p86, %p87
    %s90 = sadd.s32 %s89, 1
    %p93 = scmp.eq.s32.totalorder %s13, 1
    %p94 = scmp.ne.s32.totalorder %s89, %s91
    %p95 = scmp.eq.s32.totalorder %s13, 0
    %p96 = por %p94, %p95
    %p97 = scmp.ne.s32.totalorder %s89, %s91
    %p98 = scmp.eq.s32.totalorder %s18, 1
    %p99 = por %p97, %p98
    %p100 = scmp.ne.s32.totalorder %s91, %s92
    %p101 = scmp.eq.s32.totalorder %s18, 0
    %p102 = por %p100, %p101
    %p103 = scmp.ne.s32.totalorder %s91, %s92
    %p104 = scmp.eq.s32.totalorder %s19, 1
    %p105 = por %p103, %p104
    %p107 = scmp.ne.s32.totalorder %s92, %s106
    %p108 = scmp.eq.s32.totalorder %s19, 0
    %p109 = por %p107, %p108
    %s111 = sadd.s32 %s110, 1
    %p114 = scmp.eq.s32.totalorder %s13, 1
    %p115 = scmp.ne.s32.totalorder %s110, %s112
    %p116 = scmp.eq.s32.totalorder %s13, 0
    %p117 = por %p115, %p116
    %p118 = scmp.ne.s32.totalorder %s110, %s112
    %p119 = scmp.eq.s32.totalorder %s18, 1
    %p120 = por %p118, %p119
    %p121 = scmp.ne.s32.totalorder %s112, %s113
    %p122 = scmp.eq.s32.totalorder %s18, 0
    %p123 = por %p121, %p122
    %p124 = scmp.ne.s32.totalorder %s112, %s113
    %p125 = scmp.eq.s32.totalorder %s19, 1
    %p126 = por %p124, %p125
    %p128 = scmp.ne.s32.totalorder %s113, %s127
    %p129 = scmp.eq.s32.totalorder %s19, 0
    %p130 = por %p128, %p129
    %s132 = sadd.s32 %s131, 1
    %p135 = scmp.eq.s32.totalorder %s13, 1
    %p136 = scmp.ne.s32.totalorder %s131, %s133
    %p137 = scmp.eq.s32.totalorder %s13, 0
    %p138 = por %p136, %p137
    %p139 = scmp.ne.s32.totalorder %s131, %s133
    %p140 = scmp.eq.s32.totalorder %s18, 1
    %p141 = por %p139, %p140
    %p142 = scmp.ne.s32.totalorder %s133, %s134
    %p143 = scmp.eq.s32.totalorder %s18, 0
    %p144 = por %p142, %p143
    %p145 = scmp.ne.s32.totalorder %s133, %s134
    %p146 = scmp.eq.s32.totalorder %s19, 1
    %p147 = por %p145, %p146
    %p149 = scmp.ne.s32.totalorder %s134, %s148
    %p150 = scmp.eq.s32.totalorder %s19, 0
    %p151 = por %p149, %p150
    %s153 = sadd.s32 %s152, 1
    %p156 = scmp.eq.s32.totalorder %s13, 1
    %p157 = scmp.ne.s32.totalorder %s152, %s154
    %p158 = scmp.eq.s32.totalorder %s13, 0
    %p159 = por %p157, %p158
    %p160 = scmp.ne.s32.totalorder %s152, %s154
    %p161 = scmp.eq.s32.totalorder %s18, 1
    %p162 = por %p160, %p161
    %p163 = scmp.ne.s32.totalorder %s154, %s155
    %p164 = scmp.eq.s32.totalorder %s18, 0
    %p165 = por %p163, %p164
    %p166 = scmp.ne.s32.totalorder %s154, %s155
    %p167 = scmp.eq.s32.totalorder %s19, 1
    %p168 = por %p166, %p167
    %p170 = scmp.ne.s32.totalorder %s155, %s169
    %p171 = scmp.eq.s32.totalorder %s19, 0
    %p172 = por %p170, %p171
    %s173 = ssub.s32 %s13, %s20
    %p174 = scmp.eq.s32.totalorder %s173, 0
    %s176 = sadd.s32 %s175, 1
    %s177 = scalar_select %p174, %s175, %s176
    %p180 = pneg %p174
    %p181 = scmp.eq.s32.totalorder %s13, 1
    %p182 = por %p180, %p181
    %p183 = scmp.ne.s32.totalorder %s175, %s178
    %p184 = scmp.eq.s32.totalorder %s13, 0
    %p185 = por %p183, %p184
    %p186 = scmp.ne.s32.totalorder %s175, %s178
    %p187 = scmp.eq.s32.totalorder %s18, 1
    %p188 = por %p186, %p187
    %p189 = scmp.ne.s32.totalorder %s178, %s179
    %p190 = scmp.eq.s32.totalorder %s18, 0
    %p191 = por %p189, %p190
    %p192 = scmp.ne.s32.totalorder %s178, %s179
    %p193 = scmp.eq.s32.totalorder %s19, 1
    %p194 = por %p192, %p193
    %p196 = scmp.ne.s32.totalorder %s179, %s195
    %p197 = scmp.eq.s32.totalorder %s19, 0
    %p198 = por %p196, %p197
    %p199 = scmp.le.s32.totalorder 1, %s13
    %p200 = scmp.lt.s32.totalorder %s13, 3
    %p201 = pnand %p199, %p200
    %p202 = pneg %p201
    // Predicated region
    $region9: #{idcnn_forward.5} parent=5 // pred_check
      _
    $region10: #{idcnn_forward.5} parent=5 // pred_check_branch
      %204 = sbr.rel (%p201) target = $region12
    $region11: #{idcnn_forward.5} parent=5 // pred_region
      %s205 = ssub.s32 %s13, 1
      // Predicated region
      $region13: #{idcnn_forward.5} parent=11 // pred_check
        %p206 = pneg %p60
      $region14: #{idcnn_forward.5} parent=11 // pred_check_branch
        %208 = sbr.rel (%p206) target = $region16
      $region15: #{idcnn_forward.5} parent=11 // pred_region
        _
      $region16: #{idcnn_forward.5} parent=11 // pred_fallthru
        _
      // Predicated region
      $region17: #{idcnn_forward.5} parent=11 // pred_check
        %p209 = pneg %p81
      $region18: #{idcnn_forward.5} parent=11 // pred_check_branch
        %211 = sbr.rel (%p209) target = $region20
      $region19: #{idcnn_forward.5} parent=11 // pred_region
        _
      $region20: #{idcnn_forward.5} parent=11 // pred_fallthru
        _
      // Predicated region
      $region21: #{idcnn_forward.5} parent=11 // pred_check
        %p212 = pneg %p102
      $region22: #{idcnn_forward.5} parent=11 // pred_check_branch
        %214 = sbr.rel (%p212) target = $region24
      $region23: #{idcnn_forward.5} parent=11 // pred_region
        _
      $region24: #{idcnn_forward.5} parent=11 // pred_fallthru
        _
      // Predicated region
      $region25: #{idcnn_forward.5} parent=11 // pred_check
        %p215 = pneg %p123
      $region26: #{idcnn_forward.5} parent=11 // pred_check_branch
        %217 = sbr.rel (%p215) target = $region28
      $region27: #{idcnn_forward.5} parent=11 // pred_region
        _
      $region28: #{idcnn_forward.5} parent=11 // pred_fallthru
        _
      // Predicated region
      $region29: #{idcnn_forward.5} parent=11 // pred_check
        %p218 = pneg %p144
      $region30: #{idcnn_forward.5} parent=11 // pred_check_branch
        %220 = sbr.rel (%p218) target = $region32
      $region31: #{idcnn_forward.5} parent=11 // pred_region
        _
      $region32: #{idcnn_forward.5} parent=11 // pred_fallthru
        _
      // Predicated region
      $region33: #{idcnn_forward.5} parent=11 // pred_check
        %p221 = pneg %p165
      $region34: #{idcnn_forward.5} parent=11 // pred_check_branch
        %223 = sbr.rel (%p221) target = $region36
      $region35: #{idcnn_forward.5} parent=11 // pred_region
        _
      $region36: #{idcnn_forward.5} parent=11 // pred_fallthru
        _
    $region12: #{idcnn_forward.5} parent=5 // pred_fallthru
      _
    %p224 = scmp.lt.s32.totalorder %s13, 2
    // Predicated region
    $region37: #{idcnn_forward.5} parent=5 // pred_check
      %p225 = pneg %p224
    $region38: #{idcnn_forward.5} parent=5 // pred_check_branch
      %227 = sbr.rel (%p225) target = $region40
    $region39: #{idcnn_forward.5} parent=5 // pred_region
      // Predicated region
      $region41: #{idcnn_forward.5} parent=39 // pred_check
        %p228 = pneg %p33
      $region42: #{idcnn_forward.5} parent=39 // pred_check_branch
        %230 = sbr.rel (%p228) target = $region44
      $region43: #{idcnn_forward.5} parent=39 // pred_region
        %p231 = scmp.lt.s32.totalorder %s13, 1
        %s232 = scalar_select %p231, %s13, 1
        %s233 = smul.addr %s232, 8
        %s234 = scalar_lea.vmem %s0, %s233
      $region44: #{idcnn_forward.5} parent=39 // pred_fallthru
        _
    $region40: #{idcnn_forward.5} parent=5 // pred_fallthru
      _
    %p235 = scmp.le.s32.totalorder 1, %s13
    %p236 = scmp.lt.s32.totalorder %s13, 3
    %p237 = pnand %p235, %p236
    %p238 = pneg %p237
    // Predicated region
    $region45: #{idcnn_forward.5} parent=5 // pred_check
      _
    $region46: #{idcnn_forward.5} parent=5 // pred_check_branch
      %240 = sbr.rel (%p237) target = $region48
    $region47: #{idcnn_forward.5} parent=5 // pred_region
      %s241 = ssub.s32 %s13, 1
      %p242 = scmp.lt.s32.totalorder %s18, 1
      %s243 = scalar_select %p242, %s18, 1
      %s244 = smul.addr %s243, 8
      %s245 = scalar_lea.vmem %s0, %s244
      %p246 = pneg %p39
      %p247 = pneg %p36
      %p248 = pneg %p60
      %p249 = pneg %p57
      %p250 = pneg %p81
      %p251 = pneg %p78
      %p252 = pneg %p102
      %p253 = pneg %p99
      %p254 = pneg %p123
      %p255 = pneg %p120
      %p256 = pneg %p144
      %p257 = pneg %p141
      %p258 = pneg %p165
      %p259 = pneg %p162
      %p260 = pneg %p191
      %p261 = pneg %p188
      %p262 = scmp.lt.s32.totalorder %s18, 1
      %s263 = scalar_select %p262, %s18, 1
      %s264 = smul.addr %s263, 8
      %s265 = scalar_lea.vmem %s7, %s264
      %p266 = scmp.lt.s32.totalorder %s18, 1
      %s267 = scalar_select %p266, %s18, 1
      %s268 = smul.addr %s267, 8
      %s269 = scalar_lea.vmem %s0, %s268
      %p270 = scmp.lt.s32.totalorder %s18, 1
      %s271 = scalar_select %p270, %s18, 1
      %s272 = smul.addr %s271, 8
      %s273 = scalar_lea.vmem %s7, %s272
      %v274 = vld [vmem:[%s269] sm:$0xff]
      %v275 = vlaneseq
      %v276 = vand.u32 %v275, 127
      %vm277 = vcmp.lt.s32.totalorder %v276, 16
      %v278 = vld [vmem:[%s1] sm:$0xff]
      %vm279 = vcmask 64512
      %v281 = vsel %vm279, %v278, 0
      %283 = vmatprep.subr.mxu0 0.0
      %284 = vmatpush1.msra.mxu0 0.0
      %285 = vmatprep.subr.mxu0 0.0
      %286 = vmatpush1.msra.mxu0 0.0
      %287 = vmatprep.subr.mxu0 0.0
      %288 = vmatpush1.msra.mxu0 0.0
      %289 = vmatprep.subr.mxu0 0.0
      %290 = vmatpush1.msra.mxu0 0.0
      %291 = vmatprep.subr.mxu0 0.0
      %292 = vmatpush1.msra.mxu0 0.0
      %293 = vmatprep.subr.mxu0 0.0
      %294 = vmatpush1.msra.mxu0 0.0
      %295 = vmatprep.subr.mxu0 0.0
      %296 = vmatpush1.msra.mxu0 0.0
      %297 = vmatprep.subr.mxu0 0.0
      %298 = vmatpush1.msra.mxu0 0.0
      %299 = vmatprep.subr.mxu0 0.0
      %300 = vmatpush1.msra.mxu0 0.0
      %301 = vmatprep.subr.mxu0 0.0
      %302 = vmatpush1.msra.mxu0 0.0
      %303 = vmatprep.subr.mxu0 0.0
      %304 = vmatpush1.msra.mxu0 0.0
      %305 = vmatprep.subr.mxu0 0.0
      %306 = vmatpush1.msra.mxu0 0.0
      %307 = vmatprep.subr.mxu0 0.0
      %308 = vmatpush1.msra.mxu0 0.0
      %309 = vmatprep.subr.mxu0 0.0
      %310 = vmatpush1.msra.mxu0 0.0
      %311 = vmatprep.subr.mxu0 0.0
      %312 = vmatpush1.msra.mxu0 0.0
      %313 = vmatprep.subr.mxu0 0.0
      %314 = vmatpush1.msra.mxu0 %v274
      %315 = vmatprep.subr.mxu0 0.0
      %316 = vmatpush2.msra.mxu0 0.0
      %317 = vmatprep.subr.mxu0 0.0
      %318 = vmatpush2.msra.mxu0 0.0
      %319 = vmatprep.subr.mxu0 0.0
      %320 = vmatpush2.msra.mxu0 0.0
      %321 = vmatprep.subr.mxu0 0.0
      %322 = vmatpush2.msra.mxu0 0.0
      %323 = vmatprep.subr.mxu0 0.0
      %324 = vmatpush2.msra.mxu0 0.0
      %325 = vmatprep.subr.mxu0 0.0
      %326 = vmatpush2.msra.mxu0 0.0
      %327 = vmatprep.subr.mxu0 0.0
      %328 = vmatpush2.msra.mxu0 0.0
      %329 = vmatprep.subr.mxu0 0.0
      %330 = vmatpush2.msra.mxu0 0.0
      %331 = vmatprep.subr.mxu0 0.0
      %332 = vmatpush2.msra.mxu0 0.0
      %333 = vmatprep.subr.mxu0 0.0
      %334 = vmatpush2.msra.mxu0 0.0
      %335 = vmatprep.subr.mxu0 0.0
      %336 = vmatpush2.msra.mxu0 0.0
      %337 = vmatprep.subr.mxu0 0.0
      %338 = vmatpush2.msra.mxu0 0.0
      %339 = vmatprep.subr.mxu0 0.0
      %340 = vmatpush2.msra.mxu0 0.0
      %341 = vmatprep.subr.mxu0 0.0
      %342 = vmatpush2.msra.mxu0 0.0
      %343 = vmatprep.subr.mxu0 0.0
      %344 = vmatpush2.msra.mxu0 0.0
      %345 = vmatprep.subr.mxu0 0.0
      %346 = vmatpush2.msra.mxu0 0.0
      %347 = vmatprep.mubr.f32.mxu0 0.0
      %348 = vmatmul.mubr.f32.gmra.mxu0 %v281
      %v349 = vpop.f32.mrf.mxu0
      %v350 = vadd.f32 0.0, %v349
      %v351 = vpop.f32.mrf.mxu0
      %352 = vdwg.mxu0
      %s353 = scalar_lea.vmem %s1, 8
      %v354 = vld [vmem:[%s353] sm:$0xff]
      %s355 = scalar_lea.vmem %s1, 16
      %v356 = vld [vmem:[%s355] sm:$0xff]
      %v358 = vsel %vm279, %v356, 0
      %360 = vmatprep.subr.mxu0 0.0
      %361 = vmatpush1.msra.mxu0 0.0
      %362 = vmatprep.subr.mxu0 0.0
      %363 = vmatpush1.msra.mxu0 0.0
      %364 = vmatprep.subr.mxu0 0.0
      %365 = vmatpush1.msra.mxu0 0.0
      %366 = vmatprep.subr.mxu0 0.0
      %367 = vmatpush1.msra.mxu0 0.0
      %368 = vmatprep.subr.mxu0 0.0
      %369 = vmatpush1.msra.mxu0 0.0
      %370 = vmatprep.subr.mxu0 0.0
      %371 = vmatpush1.msra.mxu0 0.0
      %372 = vmatprep.subr.mxu0 0.0
      %373 = vmatpush1.msra.mxu0 0.0
      %374 = vmatprep.subr.mxu0 0.0
      %375 = vmatpush1.msra.mxu0 0.0
      %376 = vmatprep.subr.mxu0 0.0
      %377 = vmatpush1.msra.mxu0 0.0
      %378 = vmatprep.subr.mxu0 0.0
      %379 = vmatpush1.msra.mxu0 0.0
      %380 = vmatprep.subr.mxu0 0.0
      %381 = vmatpush1.msra.mxu0 0.0
      %382 = vmatprep.subr.mxu0 0.0
      %383 = vmatpush1.msra.mxu0 0.0
      %384 = vmatprep.subr.mxu0 0.0
      %385 = vmatpush1.msra.mxu0 0.0
      %386 = vmatprep.subr.mxu0 0.0
      %387 = vmatpush1.msra.mxu0 0.0
      %388 = vmatprep.subr.mxu0 0.0
      %389 = vmatpush1.msra.mxu0 0.0
      %390 = vmatprep.subr.mxu0 0.0
      %391 = vmatpush1.msra.mxu0 %v274
      %392 = vmatprep.subr.mxu0 0.0
      %393 = vmatpush2.msra.mxu0 0.0
      %394 = vmatprep.subr.mxu0 0.0
      %395 = vmatpush2.msra.mxu0 0.0
      %396 = vmatprep.subr.mxu0 0.0
      %397 = vmatpush2.msra.mxu0 0.0
      %398 = vmatprep.subr.mxu0 0.0
      %399 = vmatpush2.msra.mxu0 0.0
      %400 = vmatprep.subr.mxu0 0.0
      %401 = vmatpush2.msra.mxu0 0.0
      %402 = vmatprep.subr.mxu0 0.0
      %403 = vmatpush2.msra.mxu0 0.0
      %404 = vmatprep.subr.mxu0 0.0
      %405 = vmatpush2.msra.mxu0 0.0
      %406 = vmatprep.subr.mxu0 0.0
      %407 = vmatpush2.msra.mxu0 0.0
      %408 = vmatprep.subr.mxu0 0.0
      %409 = vmatpush2.msra.mxu0 0.0
      %410 = vmatprep.subr.mxu0 0.0
      %411 = vmatpush2.msra.mxu0 0.0
      %412 = vmatprep.subr.mxu0 0.0
      %413 = vmatpush2.msra.mxu0 0.0
      %414 = vmatprep.subr.mxu0 0.0
      %415 = vmatpush2.msra.mxu0 0.0
      %416 = vmatprep.subr.mxu0 0.0
      %417 = vmatpush2.msra.mxu0 0.0
      %418 = vmatprep.subr.mxu0 0.0
      %419 = vmatpush2.msra.mxu0 0.0
      %420 = vmatprep.subr.mxu0 0.0
      %421 = vmatpush2.msra.mxu0 0.0
      %422 = vmatprep.subr.mxu0 0.0
      %423 = vmatpush2.msra.mxu0 0.0
      %424 = vmatprep.mubr.f32.mxu0 0.0
      %425 = vmatmul.mubr.f32.gmra.mxu0 %v358
      %v426 = vpop.f32.mrf.mxu0
      %v427 = vadd.f32 0.0, %v426
      %v428 = vpop.f32.mrf.mxu0
      %429 = vdwg.mxu0
      %vm430 = vcmp.ge.s32.totalorder %v276, 1
      %431 = vrot.lane.b32.xlu0 %v350, 1
      %v432 = vpop.permute.xlu0 %431
      %v433 = vsel %vm430, %v432, 0.0
      %v435 = vsel %vm279, %v354, 0
      %437 = vmatprep.subr.mxu0 0.0
      %438 = vmatpush1.msra.mxu0 0.0
      %439 = vmatprep.subr.mxu0 0.0
      %440 = vmatpush1.msra.mxu0 0.0
      %441 = vmatprep.subr.mxu0 0.0
      %442 = vmatpush1.msra.mxu0 0.0
      %443 = vmatprep.subr.mxu0 0.0
      %444 = vmatpush1.msra.mxu0 0.0
      %445 = vmatprep.subr.mxu0 0.0
      %446 = vmatpush1.msra.mxu0 0.0
      %447 = vmatprep.subr.mxu0 0.0
      %448 = vmatpush1.msra.mxu0 0.0
      %449 = vmatprep.subr.mxu0 0.0
      %450 = vmatpush1.msra.mxu0 0.0
      %451 = vmatprep.subr.mxu0 0.0
      %452 = vmatpush1.msra.mxu0 0.0
      %453 = vmatprep.subr.mxu0 0.0
      %454 = vmatpush1.msra.mxu0 0.0
      %455 = vmatprep.subr.mxu0 0.0
      %456 = vmatpush1.msra.mxu0 0.0
      %457 = vmatprep.subr.mxu0 0.0
      %458 = vmatpush1.msra.mxu0 0.0
      %459 = vmatprep.subr.mxu0 0.0
      %460 = vmatpush1.msra.mxu0 0.0
      %461 = vmatprep.subr.mxu0 0.0
      %462 = vmatpush1.msra.mxu0 0.0
      %463 = vmatprep.subr.mxu0 0.0
      %464 = vmatpush1.msra.mxu0 0.0
      %465 = vmatprep.subr.mxu0 0.0
      %466 = vmatpush1.msra.mxu0 0.0
      %467 = vmatprep.subr.mxu0 0.0
      %468 = vmatpush1.msra.mxu0 %v274
      %469 = vmatprep.subr.mxu0 0.0
      %470 = vmatpush2.msra.mxu0 0.0
      %471 = vmatprep.subr.mxu0 0.0
      %472 = vmatpush2.msra.mxu0 0.0
      %473 = vmatprep.subr.mxu0 0.0
      %474 = vmatpush2.msra.mxu0 0.0
      %475 = vmatprep.subr.mxu0 0.0
      %476 = vmatpush2.msra.mxu0 0.0
      %477 = vmatprep.subr.mxu0 0.0
      %478 = vmatpush2.msra.mxu0 0.0
      %479 = vmatprep.subr.mxu0 0.0
      %480 = vmatpush2.msra.mxu0 0.0
      %481 = vmatprep.subr.mxu0 0.0
      %482 = vmatpush2.msra.mxu0 0.0
      %483 = vmatprep.subr.mxu0 0.0
      %484 = vmatpush2.msra.mxu0 0.0
      %485 = vmatprep.subr.mxu0 0.0
      %486 = vmatpush2.msra.mxu0 0.0
      %487 = vmatprep.subr.mxu0 0.0
      %488 = vmatpush2.msra.mxu0 0.0
      %489 = vmatprep.subr.mxu0 0.0
      %490 = vmatpush2.msra.mxu0 0.0
      %491 = vmatprep.subr.mxu0 0.0
      %492 = vmatpush2.msra.mxu0 0.0
      %493 = vmatprep.subr.mxu0 0.0
      %494 = vmatpush2.msra.mxu0 0.0
      %495 = vmatprep.subr.mxu0 0.0
      %496 = vmatpush2.msra.mxu0 0.0
      %497 = vmatprep.subr.mxu0 0.0
      %498 = vmatpush2.msra.mxu0 0.0
      %499 = vmatprep.subr.mxu0 0.0
      %500 = vmatpush2.msra.mxu0 0.0
      %501 = vmatprep.mubr.f32.mxu0 0.0
      %502 = vmatmul.mubr.f32.gmra.mxu0 %v435
      %v503 = vpop.f32.mrf.mxu0
      %v504 = vadd.f32 %v433, %v503
      %v505 = vpop.f32.mrf.mxu0
      %506 = vdwg.mxu0
      %vm507 = vcmp.lt.s32.totalorder %v276, 127
      %508 = vrot.lane.b32.xlu0 %v427, 127
      %v509 = vpop.permute.xlu0 %508
      %v510 = vsel %vm507, %v509, 0.0
      %v511 = vadd.f32 %v504, %v510
      %v512 = vld [vmem:[%s2] sm:$0xff]
      %514 = vset.pattern.permute.xlu0 0
      %515 = vperm.xlu0 %514, %v512
      %v516 = vpop.permute.xlu0 %515
      %v518 = vadd.f32 %v511, %v516
      %v519 = vmax.f32 %v518, 0.0
      %v520 = vrot.slane %v519, 4
      %v521 = vadd.f32 %v519, %v520
      %v522 = vrot.slane %v521, 2
      %v523 = vadd.f32 %v521, %v522
      %v524 = vrot.slane %v523, 1
      %v525 = vadd.f32 %v523, %v524
      %v526 = vrcp.pop 8.0
      %v527 = vmul.f32 %v525, %v526
      %v528 = vsub.f32 %v519, %v527
      %v529 = vmul.f32 %v528, %v528
      %v530 = vrot.slane %v529, 4
      %v531 = vadd.f32 %v529, %v530
      %v532 = vrot.slane %v531, 2
      %v533 = vadd.f32 %v531, %v532
      %v534 = vrot.slane %v533, 1
      %v535 = vadd.f32 %v533, %v534
      %v536 = vmul.f32 %v535, %v526
      %v537 = vadd.f32 %v536, 1e-05
      %v538 = vrsqrt.pop %v537
      %v539 = vmul.f32 %v528, %v538
      %v540 = vsel %vm277, %v539, 0.0
      %v541 = vld [vmem:[%s3] sm:$0xff]
      %v543 = vsel %vm279, %v541, 0
      %545 = vmatprep.subr.mxu0 0.0
      %546 = vmatpush1.msra.mxu0 0.0
      %547 = vmatprep.subr.mxu0 0.0
      %548 = vmatpush1.msra.mxu0 0.0
      %549 = vmatprep.subr.mxu0 0.0
      %550 = vmatpush1.msra.mxu0 0.0
      %551 = vmatprep.subr.mxu0 0.0
      %552 = vmatpush1.msra.mxu0 0.0
      %553 = vmatprep.subr.mxu0 0.0
      %554 = vmatpush1.msra.mxu0 0.0
      %555 = vmatprep.subr.mxu0 0.0
      %556 = vmatpush1.msra.mxu0 0.0
      %557 = vmatprep.subr.mxu0 0.0
      %558 = vmatpush1.msra.mxu0 0.0
      %559 = vmatprep.subr.mxu0 0.0
      %560 = vmatpush1.msra.mxu0 0.0
      %561 = vmatprep.subr.mxu0 0.0
      %562 = vmatpush1.msra.mxu0 0.0
      %563 = vmatprep.subr.mxu0 0.0
      %564 = vmatpush1.msra.mxu0 0.0
      %565 = vmatprep.subr.mxu0 0.0
      %566 = vmatpush1.msra.mxu0 0.0
      %567 = vmatprep.subr.mxu0 0.0
      %568 = vmatpush1.msra.mxu0 0.0
      %569 = vmatprep.subr.mxu0 0.0
      %570 = vmatpush1.msra.mxu0 0.0
      %571 = vmatprep.subr.mxu0 0.0
      %572 = vmatpush1.msra.mxu0 0.0
      %573 = vmatprep.subr.mxu0 0.0
      %574 = vmatpush1.msra.mxu0 0.0
      %575 = vmatprep.subr.mxu0 0.0
      %576 = vmatpush1.msra.mxu0 %v540
      %577 = vmatprep.subr.mxu0 0.0
      %578 = vmatpush2.msra.mxu0 0.0
      %579 = vmatprep.subr.mxu0 0.0
      %580 = vmatpush2.msra.mxu0 0.0
      %581 = vmatprep.subr.mxu0 0.0
      %582 = vmatpush2.msra.mxu0 0.0
      %583 = vmatprep.subr.mxu0 0.0
      %584 = vmatpush2.msra.mxu0 0.0
      %585 = vmatprep.subr.mxu0 0.0
      %586 = vmatpush2.msra.mxu0 0.0
      %587 = vmatprep.subr.mxu0 0.0
      %588 = vmatpush2.msra.mxu0 0.0
      %589 = vmatprep.subr.mxu0 0.0
      %590 = vmatpush2.msra.mxu0 0.0
      %591 = vmatprep.subr.mxu0 0.0
      %592 = vmatpush2.msra.mxu0 0.0
      %593 = vmatprep.subr.mxu0 0.0
      %594 = vmatpush2.msra.mxu0 0.0
      %595 = vmatprep.subr.mxu0 0.0
      %596 = vmatpush2.msra.mxu0 0.0
      %597 = vmatprep.subr.mxu0 0.0
      %598 = vmatpush2.msra.mxu0 0.0
      %599 = vmatprep.subr.mxu0 0.0
      %600 = vmatpush2.msra.mxu0 0.0
      %601 = vmatprep.subr.mxu0 0.0
      %602 = vmatpush2.msra.mxu0 0.0
      %603 = vmatprep.subr.mxu0 0.0
      %604 = vmatpush2.msra.mxu0 0.0
      %605 = vmatprep.subr.mxu0 0.0
      %606 = vmatpush2.msra.mxu0 0.0
      %607 = vmatprep.subr.mxu0 0.0
      %608 = vmatpush2.msra.mxu0 0.0
      %609 = vmatprep.mubr.f32.mxu0 0.0
      %610 = vmatmul.mubr.f32.gmra.mxu0 %v543
      %v611 = vpop.f32.mrf.mxu0
      %v612 = vadd.f32 0.0, %v611
      %v613 = vpop.f32.mrf.mxu0
      %614 = vdwg.mxu0
      %s615 = scalar_lea.vmem %s3, 8
      %v616 = vld [vmem:[%s615] sm:$0xff]
      %s617 = scalar_lea.vmem %s3, 16
      %v618 = vld [vmem:[%s617] sm:$0xff]
      %v620 = vsel %vm279, %v618, 0
      %622 = vmatprep.subr.mxu0 0.0
      %623 = vmatpush1.msra.mxu0 0.0
      %624 = vmatprep.subr.mxu0 0.0
      %625 = vmatpush1.msra.mxu0 0.0
      %626 = vmatprep.subr.mxu0 0.0
      %627 = vmatpush1.msra.mxu0 0.0
      %628 = vmatprep.subr.mxu0 0.0
      %629 = vmatpush1.msra.mxu0 0.0
      %630 = vmatprep.subr.mxu0 0.0
      %631 = vmatpush1.msra.mxu0 0.0
      %632 = vmatprep.subr.mxu0 0.0
      %633 = vmatpush1.msra.mxu0 0.0
      %634 = vmatprep.subr.mxu0 0.0
      %635 = vmatpush1.msra.mxu0 0.0
      %636 = vmatprep.subr.mxu0 0.0
      %637 = vmatpush1.msra.mxu0 0.0
      %638 = vmatprep.subr.mxu0 0.0
      %639 = vmatpush1.msra.mxu0 0.0
      %640 = vmatprep.subr.mxu0 0.0
      %641 = vmatpush1.msra.mxu0 0.0
      %642 = vmatprep.subr.mxu0 0.0
      %643 = vmatpush1.msra.mxu0 0.0
      %644 = vmatprep.subr.mxu0 0.0
      %645 = vmatpush1.msra.mxu0 0.0
      %646 = vmatprep.subr.mxu0 0.0
      %647 = vmatpush1.msra.mxu0 0.0
      %648 = vmatprep.subr.mxu0 0.0
      %649 = vmatpush1.msra.mxu0 0.0
      %650 = vmatprep.subr.mxu0 0.0
      %651 = vmatpush1.msra.mxu0 0.0
      %652 = vmatprep.subr.mxu0 0.0
      %653 = vmatpush1.msra.mxu0 %v540
      %654 = vmatprep.subr.mxu0 0.0
      %655 = vmatpush2.msra.mxu0 0.0
      %656 = vmatprep.subr.mxu0 0.0
      %657 = vmatpush2.msra.mxu0 0.0
      %658 = vmatprep.subr.mxu0 0.0
      %659 = vmatpush2.msra.mxu0 0.0
      %660 = vmatprep.subr.mxu0 0.0
      %661 = vmatpush2.msra.mxu0 0.0
      %662 = vmatprep.subr.mxu0 0.0
      %663 = vmatpush2.msra.mxu0 0.0
      %664 = vmatprep.subr.mxu0 0.0
      %665 = vmatpush2.msra.mxu0 0.0
      %666 = vmatprep.subr.mxu0 0.0
      %667 = vmatpush2.msra.mxu0 0.0
      %668 = vmatprep.subr.mxu0 0.0
      %669 = vmatpush2.msra.mxu0 0.0
      %670 = vmatprep.subr.mxu0 0.0
      %671 = vmatpush2.msra.mxu0 0.0
      %672 = vmatprep.subr.mxu0 0.0
      %673 = vmatpush2.msra.mxu0 0.0
      %674 = vmatprep.subr.mxu0 0.0
      %675 = vmatpush2.msra.mxu0 0.0
      %676 = vmatprep.subr.mxu0 0.0
      %677 = vmatpush2.msra.mxu0 0.0
      %678 = vmatprep.subr.mxu0 0.0
      %679 = vmatpush2.msra.mxu0 0.0
      %680 = vmatprep.subr.mxu0 0.0
      %681 = vmatpush2.msra.mxu0 0.0
      %682 = vmatprep.subr.mxu0 0.0
      %683 = vmatpush2.msra.mxu0 0.0
      %684 = vmatprep.subr.mxu0 0.0
      %685 = vmatpush2.msra.mxu0 0.0
      %686 = vmatprep.mubr.f32.mxu0 0.0
      %687 = vmatmul.mubr.f32.gmra.mxu0 %v620
      %v688 = vpop.f32.mrf.mxu0
      %v689 = vadd.f32 0.0, %v688
      %v690 = vpop.f32.mrf.mxu0
      %691 = vdwg.mxu0
      %692 = vrot.lane.b32.xlu0 %v612, 1
      %v693 = vpop.permute.xlu0 %692
      %v694 = vsel %vm430, %v693, 0.0
      %v696 = vsel %vm279, %v616, 0
      %698 = vmatprep.subr.mxu0 0.0
      %699 = vmatpush1.msra.mxu0 0.0
      %700 = vmatprep.subr.mxu0 0.0
      %701 = vmatpush1.msra.mxu0 0.0
      %702 = vmatprep.subr.mxu0 0.0
      %703 = vmatpush1.msra.mxu0 0.0
      %704 = vmatprep.subr.mxu0 0.0
      %705 = vmatpush1.msra.mxu0 0.0
      %706 = vmatprep.subr.mxu0 0.0
      %707 = vmatpush1.msra.mxu0 0.0
      %708 = vmatprep.subr.mxu0 0.0
      %709 = vmatpush1.msra.mxu0 0.0
      %710 = vmatprep.subr.mxu0 0.0
      %711 = vmatpush1.msra.mxu0 0.0
      %712 = vmatprep.subr.mxu0 0.0
      %713 = vmatpush1.msra.mxu0 0.0
      %714 = vmatprep.subr.mxu0 0.0
      %715 = vmatpush1.msra.mxu0 0.0
      %716 = vmatprep.subr.mxu0 0.0
      %717 = vmatpush1.msra.mxu0 0.0
      %718 = vmatprep.subr.mxu0 0.0
      %719 = vmatpush1.msra.mxu0 0.0
      %720 = vmatprep.subr.mxu0 0.0
      %721 = vmatpush1.msra.mxu0 0.0
      %722 = vmatprep.subr.mxu0 0.0
      %723 = vmatpush1.msra.mxu0 0.0
      %724 = vmatprep.subr.mxu0 0.0
      %725 = vmatpush1.msra.mxu0 0.0
      %726 = vmatprep.subr.mxu0 0.0
      %727 = vmatpush1.msra.mxu0 0.0
      %728 = vmatprep.subr.mxu0 0.0
      %729 = vmatpush1.msra.mxu0 %v540
      %730 = vmatprep.subr.mxu0 0.0
      %731 = vmatpush2.msra.mxu0 0.0
      %732 = vmatprep.subr.mxu0 0.0
      %733 = vmatpush2.msra.mxu0 0.0
      %734 = vmatprep.subr.mxu0 0.0
      %735 = vmatpush2.msra.mxu0 0.0
      %736 = vmatprep.subr.mxu0 0.0
      %737 = vmatpush2.msra.mxu0 0.0
      %738 = vmatprep.subr.mxu0 0.0
      %739 = vmatpush2.msra.mxu0 0.0
      %740 = vmatprep.subr.mxu0 0.0
      %741 = vmatpush2.msra.mxu0 0.0
      %742 = vmatprep.subr.mxu0 0.0
      %743 = vmatpush2.msra.mxu0 0.0
      %744 = vmatprep.subr.mxu0 0.0
      %745 = vmatpush2.msra.mxu0 0.0
      %746 = vmatprep.subr.mxu0 0.0
      %747 = vmatpush2.msra.mxu0 0.0
      %748 = vmatprep.subr.mxu0 0.0
      %749 = vmatpush2.msra.mxu0 0.0
      %750 = vmatprep.subr.mxu0 0.0
      %751 = vmatpush2.msra.mxu0 0.0
      %752 = vmatprep.subr.mxu0 0.0
      %753 = vmatpush2.msra.mxu0 0.0
      %754 = vmatprep.subr.mxu0 0.0
      %755 = vmatpush2.msra.mxu0 0.0
      %756 = vmatprep.subr.mxu0 0.0
      %757 = vmatpush2.msra.mxu0 0.0
      %758 = vmatprep.subr.mxu0 0.0
      %759 = vmatpush2.msra.mxu0 0.0
      %760 = vmatprep.subr.mxu0 0.0
      %761 = vmatpush2.msra.mxu0 0.0
      %762 = vmatprep.mubr.f32.mxu0 0.0
      %763 = vmatmul.mubr.f32.gmra.mxu0 %v696
      %v764 = vpop.f32.mrf.mxu0
      %v765 = vadd.f32 %v694, %v764
      %v766 = vpop.f32.mrf.mxu0
      %767 = vdwg.mxu0
      %768 = vrot.lane.b32.xlu0 %v689, 127
      %v769 = vpop.permute.xlu0 %768
      %v770 = vsel %vm507, %v769, 0.0
      %v771 = vadd.f32 %v765, %v770
      %v772 = vld [vmem:[%s4] sm:$0xff]
      %774 = vset.pattern.permute.xlu0 0
      %775 = vperm.xlu0 %774, %v772
      %v776 = vpop.permute.xlu0 %775
      %v778 = vadd.f32 %v771, %v776
      %v779 = vsel %vm277, %v778, 0.0
      %v780 = vld [vmem:[%s5] sm:$0xff]
      %v782 = vsel %vm279, %v780, 0
      %784 = vmatprep.subr.mxu0 0.0
      %785 = vmatpush1.msra.mxu0 0.0
      %786 = vmatprep.subr.mxu0 0.0
      %787 = vmatpush1.msra.mxu0 0.0
      %788 = vmatprep.subr.mxu0 0.0
      %789 = vmatpush1.msra.mxu0 0.0
      %790 = vmatprep.subr.mxu0 0.0
      %791 = vmatpush1.msra.mxu0 0.0
      %792 = vmatprep.subr.mxu0 0.0
      %793 = vmatpush1.msra.mxu0 0.0
      %794 = vmatprep.subr.mxu0 0.0
      %795 = vmatpush1.msra.mxu0 0.0
      %796 = vmatprep.subr.mxu0 0.0
      %797 = vmatpush1.msra.mxu0 0.0
      %798 = vmatprep.subr.mxu0 0.0
      %799 = vmatpush1.msra.mxu0 0.0
      %800 = vmatprep.subr.mxu0 0.0
      %801 = vmatpush1.msra.mxu0 0.0
      %802 = vmatprep.subr.mxu0 0.0
      %803 = vmatpush1.msra.mxu0 0.0
      %804 = vmatprep.subr.mxu0 0.0
      %805 = vmatpush1.msra.mxu0 0.0
      %806 = vmatprep.subr.mxu0 0.0
      %807 = vmatpush1.msra.mxu0 0.0
      %808 = vmatprep.subr.mxu0 0.0
      %809 = vmatpush1.msra.mxu0 0.0
      %810 = vmatprep.subr.mxu0 0.0
      %811 = vmatpush1.msra.mxu0 0.0
      %812 = vmatprep.subr.mxu0 0.0
      %813 = vmatpush1.msra.mxu0 0.0
      %814 = vmatprep.subr.mxu0 0.0
      %815 = vmatpush1.msra.mxu0 %v779
      %816 = vmatprep.subr.mxu0 0.0
      %817 = vmatpush2.msra.mxu0 0.0
      %818 = vmatprep.subr.mxu0 0.0
      %819 = vmatpush2.msra.mxu0 0.0
      %820 = vmatprep.subr.mxu0 0.0
      %821 = vmatpush2.msra.mxu0 0.0
      %822 = vmatprep.subr.mxu0 0.0
      %823 = vmatpush2.msra.mxu0 0.0
      %824 = vmatprep.subr.mxu0 0.0
      %825 = vmatpush2.msra.mxu0 0.0
      %826 = vmatprep.subr.mxu0 0.0
      %827 = vmatpush2.msra.mxu0 0.0
      %828 = vmatprep.subr.mxu0 0.0
      %829 = vmatpush2.msra.mxu0 0.0
      %830 = vmatprep.subr.mxu0 0.0
      %831 = vmatpush2.msra.mxu0 0.0
      %832 = vmatprep.subr.mxu0 0.0
      %833 = vmatpush2.msra.mxu0 0.0
      %834 = vmatprep.subr.mxu0 0.0
      %835 = vmatpush2.msra.mxu0 0.0
      %836 = vmatprep.subr.mxu0 0.0
      %837 = vmatpush2.msra.mxu0 0.0
      %838 = vmatprep.subr.mxu0 0.0
      %839 = vmatpush2.msra.mxu0 0.0
      %840 = vmatprep.subr.mxu0 0.0
      %841 = vmatpush2.msra.mxu0 0.0
      %842 = vmatprep.subr.mxu0 0.0
      %843 = vmatpush2.msra.mxu0 0.0
      %844 = vmatprep.subr.mxu0 0.0
      %845 = vmatpush2.msra.mxu0 0.0
      %846 = vmatprep.subr.mxu0 0.0
      %847 = vmatpush2.msra.mxu0 0.0
      %848 = vmatprep.mubr.f32.mxu0 0.0
      %849 = vmatmul.mubr.f32.gmra.mxu0 %v782
      %v850 = vpop.f32.mrf.mxu0
      %v851 = vadd.f32 0.0, %v850
      %v852 = vpop.f32.mrf.mxu0
      %853 = vdwg.mxu0
      %s854 = scalar_lea.vmem %s5, 8
      %v855 = vld [vmem:[%s854] sm:$0xff]
      %s856 = scalar_lea.vmem %s5, 16
      %v857 = vld [vmem:[%s856] sm:$0xff]
      %v859 = vsel %vm279, %v857, 0
      %861 = vmatprep.subr.mxu0 0.0
      %862 = vmatpush1.msra.mxu0 0.0
      %863 = vmatprep.subr.mxu0 0.0
      %864 = vmatpush1.msra.mxu0 0.0
      %865 = vmatprep.subr.mxu0 0.0
      %866 = vmatpush1.msra.mxu0 0.0
      %867 = vmatprep.subr.mxu0 0.0
      %868 = vmatpush1.msra.mxu0 0.0
      %869 = vmatprep.subr.mxu0 0.0
      %870 = vmatpush1.msra.mxu0 0.0
      %871 = vmatprep.subr.mxu0 0.0
      %872 = vmatpush1.msra.mxu0 0.0
      %873 = vmatprep.subr.mxu0 0.0
      %874 = vmatpush1.msra.mxu0 0.0
      %875 = vmatprep.subr.mxu0 0.0
      %876 = vmatpush1.msra.mxu0 0.0
      %877 = vmatprep.subr.mxu0 0.0
      %878 = vmatpush1.msra.mxu0 0.0
      %879 = vmatprep.subr.mxu0 0.0
      %880 = vmatpush1.msra.mxu0 0.0
      %881 = vmatprep.subr.mxu0 0.0
      %882 = vmatpush1.msra.mxu0 0.0
      %883 = vmatprep.subr.mxu0 0.0
      %884 = vmatpush1.msra.mxu0 0.0
      %885 = vmatprep.subr.mxu0 0.0
      %886 = vmatpush1.msra.mxu0 0.0
      %887 = vmatprep.subr.mxu0 0.0
      %888 = vmatpush1.msra.mxu0 0.0
      %889 = vmatprep.subr.mxu0 0.0
      %890 = vmatpush1.msra.mxu0 0.0
      %891 = vmatprep.subr.mxu0 0.0
      %892 = vmatpush1.msra.mxu0 %v779
      %893 = vmatprep.subr.mxu0 0.0
      %894 = vmatpush2.msra.mxu0 0.0
      %895 = vmatprep.subr.mxu0 0.0
      %896 = vmatpush2.msra.mxu0 0.0
      %897 = vmatprep.subr.mxu0 0.0
      %898 = vmatpush2.msra.mxu0 0.0
      %899 = vmatprep.subr.mxu0 0.0
      %900 = vmatpush2.msra.mxu0 0.0
      %901 = vmatprep.subr.mxu0 0.0
      %902 = vmatpush2.msra.mxu0 0.0
      %903 = vmatprep.subr.mxu0 0.0
      %904 = vmatpush2.msra.mxu0 0.0
      %905 = vmatprep.subr.mxu0 0.0
      %906 = vmatpush2.msra.mxu0 0.0
      %907 = vmatprep.subr.mxu0 0.0
      %908 = vmatpush2.msra.mxu0 0.0
      %909 = vmatprep.subr.mxu0 0.0
      %910 = vmatpush2.msra.mxu0 0.0
      %911 = vmatprep.subr.mxu0 0.0
      %912 = vmatpush2.msra.mxu0 0.0
      %913 = vmatprep.subr.mxu0 0.0
      %914 = vmatpush2.msra.mxu0 0.0
      %915 = vmatprep.subr.mxu0 0.0
      %916 = vmatpush2.msra.mxu0 0.0
      %917 = vmatprep.subr.mxu0 0.0
      %918 = vmatpush2.msra.mxu0 0.0
      %919 = vmatprep.subr.mxu0 0.0
      %920 = vmatpush2.msra.mxu0 0.0
      %921 = vmatprep.subr.mxu0 0.0
      %922 = vmatpush2.msra.mxu0 0.0
      %923 = vmatprep.subr.mxu0 0.0
      %924 = vmatpush2.msra.mxu0 0.0
      %925 = vmatprep.mubr.f32.mxu0 0.0
      %926 = vmatmul.mubr.f32.gmra.mxu0 %v859
      %v927 = vpop.f32.mrf.mxu0
      %v928 = vadd.f32 0.0, %v927
      %v929 = vpop.f32.mrf.mxu0
      %930 = vdwg.mxu0
      %vm931 = vcmp.ge.s32.totalorder %v276, 2
      %932 = vrot.lane.b32.xlu0 %v851, 2
      %v933 = vpop.permute.xlu0 %932
      %v934 = vsel %vm931, %v933, 0.0
      %v936 = vsel %vm279, %v855, 0
      %938 = vmatprep.subr.mxu0 0.0
      %939 = vmatpush1.msra.mxu0 0.0
      %940 = vmatprep.subr.mxu0 0.0
      %941 = vmatpush1.msra.mxu0 0.0
      %942 = vmatprep.subr.mxu0 0.0
      %943 = vmatpush1.msra.mxu0 0.0
      %944 = vmatprep.subr.mxu0 0.0
      %945 = vmatpush1.msra.mxu0 0.0
      %946 = vmatprep.subr.mxu0 0.0
      %947 = vmatpush1.msra.mxu0 0.0
      %948 = vmatprep.subr.mxu0 0.0
      %949 = vmatpush1.msra.mxu0 0.0
      %950 = vmatprep.subr.mxu0 0.0
      %951 = vmatpush1.msra.mxu0 0.0
      %952 = vmatprep.subr.mxu0 0.0
      %953 = vmatpush1.msra.mxu0 0.0
      %954 = vmatprep.subr.mxu0 0.0
      %955 = vmatpush1.msra.mxu0 0.0
      %956 = vmatprep.subr.mxu0 0.0
      %957 = vmatpush1.msra.mxu0 0.0
      %958 = vmatprep.subr.mxu0 0.0
      %959 = vmatpush1.msra.mxu0 0.0
      %960 = vmatprep.subr.mxu0 0.0
      %961 = vmatpush1.msra.mxu0 0.0
      %962 = vmatprep.subr.mxu0 0.0
      %963 = vmatpush1.msra.mxu0 0.0
      %964 = vmatprep.subr.mxu0 0.0
      %965 = vmatpush1.msra.mxu0 0.0
      %966 = vmatprep.subr.mxu0 0.0
      %967 = vmatpush1.msra.mxu0 0.0
      %968 = vmatprep.subr.mxu0 0.0
      %969 = vmatpush1.msra.mxu0 %v779
      %970 = vmatprep.subr.mxu0 0.0
      %971 = vmatpush2.msra.mxu0 0.0
      %972 = vmatprep.subr.mxu0 0.0
      %973 = vmatpush2.msra.mxu0 0.0
      %974 = vmatprep.subr.mxu0 0.0
      %975 = vmatpush2.msra.mxu0 0.0
      %976 = vmatprep.subr.mxu0 0.0
      %977 = vmatpush2.msra.mxu0 0.0
      %978 = vmatprep.subr.mxu0 0.0
      %979 = vmatpush2.msra.mxu0 0.0
      %980 = vmatprep.subr.mxu0 0.0
      %981 = vmatpush2.msra.mxu0 0.0
      %982 = vmatprep.subr.mxu0 0.0
      %983 = vmatpush2.msra.mxu0 0.0
      %984 = vmatprep.subr.mxu0 0.0
      %985 = vmatpush2.msra.mxu0 0.0
      %986 = vmatprep.subr.mxu0 0.0
      %987 = vmatpush2.msra.mxu0 0.0
      %988 = vmatprep.subr.mxu0 0.0
      %989 = vmatpush2.msra.mxu0 0.0
      %990 = vmatprep.subr.mxu0 0.0
      %991 = vmatpush2.msra.mxu0 0.0
      %992 = vmatprep.subr.mxu0 0.0
      %993 = vmatpush2.msra.mxu0 0.0
      %994 = vmatprep.subr.mxu0 0.0
      %995 = vmatpush2.msra.mxu0 0.0
      %996 = vmatprep.subr.mxu0 0.0
      %997 = vmatpush2.msra.mxu0 0.0
      %998 = vmatprep.subr.mxu0 0.0
      %999 = vmatpush2.msra.mxu0 0.0
      %1000 = vmatprep.subr.mxu0 0.0
      %1001 = vmatpush2.msra.mxu0 0.0
      %1002 = vmatprep.mubr.f32.mxu0 0.0
      %1003 = vmatmul.mubr.f32.gmra.mxu0 %v936
      %v1004 = vpop.f32.mrf.mxu0
      %v1005 = vadd.f32 %v934, %v1004
      %v1006 = vpop.f32.mrf.mxu0
      %1007 = vdwg.mxu0
      %vm1008 = vcmp.lt.s32.totalorder %v276, 126
      %1009 = vrot.lane.b32.xlu0 %v928, 126
      %v1010 = vpop.permute.xlu0 %1009
      %v1011 = vsel %vm1008, %v1010, 0.0
      %v1012 = vadd.f32 %v1005, %v1011
      %v1013 = vld [vmem:[%s6] sm:$0xff]
      %1015 = vset.pattern.permute.xlu0 0
      %1016 = vperm.xlu0 %1015, %v1013
      %v1017 = vpop.permute.xlu0 %1016
      %v1019 = vadd.f32 %v1012, %v1017
      %v1020 = vsel %vm277, %v1019, 0.0
      %1021 = vst [vmem:[%s273] sm:$0xff] %v1020
      %p1022 = scmp.lt.s32.totalorder %s18, 1
      %s1023 = scalar_select %p1022, %s18, 1
      %s1024 = smul.addr %s1023, 8
      %s1025 = scalar_lea.vmem %s7, %s1024
      // Predicated region
      $region49: #{idcnn_forward.5} parent=47 // pred_check
        %p1026 = pneg %p188
      $region50: #{idcnn_forward.5} parent=47 // pred_check_branch
        %1028 = sbr.rel (%p1026) target = $region52
      $region51: #{idcnn_forward.5} parent=47 // pred_region
        _
      $region52: #{idcnn_forward.5} parent=47 // pred_fallthru
        _
    $region48: #{idcnn_forward.5} parent=5 // pred_fallthru
      _
    %p1029 = scmp.le.s32.totalorder 2, %s13
    // Predicated region
    $region53: #{idcnn_forward.5} parent=5 // pred_check
      %p1030 = pneg %p1029
    $region54: #{idcnn_forward.5} parent=5 // pred_check_branch
      %1032 = sbr.rel (%p1030) target = $region56
    $region55: #{idcnn_forward.5} parent=5 // pred_region
      %s1033 = ssub.s32 %s13, 2
      // Predicated region
      $region57: #{idcnn_forward.5} parent=55 // pred_check
        %p1034 = pneg %p194
      $region58: #{idcnn_forward.5} parent=55 // pred_check_branch
        %1036 = sbr.rel (%p1034) target = $region60
      $region59: #{idcnn_forward.5} parent=55 // pred_region
        %p1037 = scmp.lt.s32.totalorder %s19, 1
        %s1038 = scalar_select %p1037, %s19, 1
        %s1039 = smul.addr %s1038, 8
        %s1040 = scalar_lea.vmem %s7, %s1039
      $region60: #{idcnn_forward.5} parent=55 // pred_fallthru
        _
    $region56: #{idcnn_forward.5} parent=5 // pred_fallthru
      _
  $region6: #{idcnn_forward.5} parent=0 // loop_footer
    %s17 = sadd.s32 1, %s13
  $region7: #{idcnn_forward.5} parent=0 // loop_footer_branch
    %12 = sbr.rel target = $region3
  $region8: #{idcnn_forward.5} parent=0 // loop_exit
    _

// kernel: idcnn_forward.4
$region0: #{idcnn_forward.4}
  #allocation0 [shape = 'u32[]', space=smem, size = 0x4, offset = 0x4, fixed_abs, tag = 'smem constant byte address 0x4 - core index']
  #allocation1 [shape = 'u32[144,128]{1,0:T(1,128)}', space=vmem, size = 0x12000, scoped, tag = 'internal scratch']
  %s0 = inlined_call_operand.vmem [shape: f32[2,8,128], index: 0, kind: input, shape index: {}]
  %s1 = inlined_call_operand.vmem [shape: f32[3,8,8], index: 1, kind: input, shape index: {}]
  %s2 = inlined_call_operand.vmem [shape: f32[8,1], index: 2, kind: input, shape index: {}]
  %s3 = inlined_call_operand.vmem [shape: f32[3,8,8], index: 3, kind: input, shape index: {}]
  %s4 = inlined_call_operand.vmem [shape: f32[8,1], index: 4, kind: input, shape index: {}]
  %s5 = inlined_call_operand.vmem [shape: f32[3,8,8], index: 5, kind: input, shape index: {}]
  %s6 = inlined_call_operand.vmem [shape: f32[8,1], index: 6, kind: input, shape index: {}]
  %s7 = inlined_call_operand.vmem [shape: f32[2,8,128], index: 7, kind: output, shape index: {}]
  %s8 = sld [smem:[#allocation0]]
  $region61: #{idcnn_forward.4} parent=0
    _
  %s10 = ssub.s32 1, %s8
  %s11 = scalar_select 0, %s10, %s8
  loop: start=0, step=1, limit=4
  $region2: #{idcnn_forward.4} parent=0 // loop_pre_header
    _
  $region3: #{idcnn_forward.4} parent=0 // loop_header
    %s13 = sphi 0, %s17
    %p14 = scmp.ge.s32.totalorder %s13, 4
    %s23 = sphi 0, %s25
    %s26 = sphi 0, %s23
    %s27 = sphi 0, %s26
    %s43 = sphi 0, %s27
    %s47 = sphi 0, %s47
    %s49 = sphi 0, %s47
    %s50 = sphi 0, %s49
    %s64 = sphi 0, %s50
    %s68 = sphi 0, %s68
    %s70 = sphi 0, %s68
    %s71 = sphi 0, %s70
    %s85 = sphi 0, %s71
    %s89 = sphi 0, %s89
    %s91 = sphi 0, %s89
    %s92 = sphi 0, %s91
    %s106 = sphi 0, %s92
    %s110 = sphi 0, %s110
    %s112 = sphi 0, %s110
    %s113 = sphi 0, %s112
    %s127 = sphi 0, %s113
    %s131 = sphi 0, %s131
    %s133 = sphi 0, %s131
    %s134 = sphi 0, %s133
    %s148 = sphi 0, %s134
    %s152 = sphi 0, %s152
    %s154 = sphi 0, %s152
    %s155 = sphi 0, %s154
    %s169 = sphi 0, %s155
    %s175 = sphi 0, %s177
    %s178 = sphi 0, %s175
    %s179 = sphi 0, %s178
    %s195 = sphi 0, %s179
  $region4: #{idcnn_forward.4} parent=0 // loop_header_branch
    %16 = sbr.rel (%p14) target = $region8
  $region5: #{idcnn_forward.4} parent=0 // loop_body
    %s18 = ssub.s32 %s13, 1
    %s19 = ssub.s32 %s13, 2
    %s20 = sadd.s32 %s13, 1
    %s21 = ssub.s32 %s13, %s20
    %p22 = scmp.eq.s32.totalorder %s21, 0
    %s24 = sadd.s32 %s23, 1
    %s25 = scalar_select %p22, %s23, %s24
    %p28 = pneg %p22
    %p29 = scmp.eq.s32.totalorder %s13, 1
    %p30 = por %p28, %p29
    %p31 = scmp.ne.s32.totalorder %s23, %s26
    %p32 = scmp.eq.s32.totalorder %s13, 0
    %p33 = por %p31, %p32
    %p34 = scmp.ne.s32.totalorder %s23, %s26
    %p35 = scmp.eq.s32.totalorder %s18, 1
    %p36 = por %p34, %p35
    %p37 = scmp.ne.s32.totalorder %s26, %s27
    %p38 = scmp.eq.s32.totalorder %s18, 0
    %p39 = por %p37, %p38
    %p40 = scmp.ne.s32.totalorder %s26, %s27
    %p41 = scmp.eq.s32.totalorder %s19, 1
    %p42 = por %p40, %p41
    %p44 = scmp.ne.s32.totalorder %s27, %s43
    %p45 = scmp.eq.s32.totalorder %s19, 0
    %p46 = por %p44, %p45
    %s48 = sadd.s32 %s47, 1
    %p51 = scmp.eq.s32.totalorder %s13, 1
    %p52 = scmp.ne.s32.totalorder %s47, %s49
    %p53 = scmp.eq.s32.totalorder %s13, 0
    %p54 = por %p52, %p53
    %p55 = scmp.ne.s32.totalorder %s47, %s49
    %p56 = scmp.eq.s32.totalorder %s18, 1
    %p57 = por %p55, %p56
    %p58 = scmp.ne.s32.totalorder %s49, %s50
    %p59 = scmp.eq.s32.totalorder %s18, 0
    %p60 = por %p58, %p59
    %p61 = scmp.ne.s32.totalorder %s49, %s50
    %p62 = scmp.eq.s32.totalorder %s19, 1
    %p63 = por %p61, %p62
    %p65 = scmp.ne.s32.totalorder %s50, %s64
    %p66 = scmp.eq.s32.totalorder %s19, 0
    %p67 = por %p65, %p66
    %s69 = sadd.s32 %s68, 1
    %p72 = scmp.eq.s32.totalorder %s13, 1
    %p73 = scmp.ne.s32.totalorder %s68, %s70
    %p74 = scmp.eq.s32.totalorder %s13, 0
    %p75 = por %p73, %p74
    %p76 = scmp.ne.s32.totalorder %s68, %s70
    %p77 = scmp.eq.s32.totalorder %s18, 1
    %p78 = por %p76, %p77
    %p79 = scmp.ne.s32.totalorder %s70, %s71
    %p80 = scmp.eq.s32.totalorder %s18, 0
    %p81 = por %p79, %p80
    %p82 = scmp.ne.s32.totalorder %s70, %s71
    %p83 = scmp.eq.s32.totalorder %s19, 1
    %p84 = por %p82, %p83
    %p86 = scmp.ne.s32.totalorder %s71, %s85
    %p87 = scmp.eq.s32.totalorder %s19, 0
    %p88 = por %p86, %p87
    %s90 = sadd.s32 %s89, 1
    %p93 = scmp.eq.s32.totalorder %s13, 1
    %p94 = scmp.ne.s32.totalorder %s89, %s91
    %p95 = scmp.eq.s32.totalorder %s13, 0
    %p96 = por %p94, %p95
    %p97 = scmp.ne.s32.totalorder %s89, %s91
    %p98 = scmp.eq.s32.totalorder %s18, 1
    %p99 = por %p97, %p98
    %p100 = scmp.ne.s32.totalorder %s91, %s92
    %p101 = scmp.eq.s32.totalorder %s18, 0
    %p102 = por %p100, %p101
    %p103 = scmp.ne.s32.totalorder %s91, %s92
    %p104 = scmp.eq.s32.totalorder %s19, 1
    %p105 = por %p103, %p104
    %p107 = scmp.ne.s32.totalorder %s92, %s106
    %p108 = scmp.eq.s32.totalorder %s19, 0
    %p109 = por %p107, %p108
    %s111 = sadd.s32 %s110, 1
    %p114 = scmp.eq.s32.totalorder %s13, 1
    %p115 = scmp.ne.s32.totalorder %s110, %s112
    %p116 = scmp.eq.s32.totalorder %s13, 0
    %p117 = por %p115, %p116
    %p118 = scmp.ne.s32.totalorder %s110, %s112
    %p119 = scmp.eq.s32.totalorder %s18, 1
    %p120 = por %p118, %p119
    %p121 = scmp.ne.s32.totalorder %s112, %s113
    %p122 = scmp.eq.s32.totalorder %s18, 0
    %p123 = por %p121, %p122
    %p124 = scmp.ne.s32.totalorder %s112, %s113
    %p125 = scmp.eq.s32.totalorder %s19, 1
    %p126 = por %p124, %p125
    %p128 = scmp.ne.s32.totalorder %s113, %s127
    %p129 = scmp.eq.s32.totalorder %s19, 0
    %p130 = por %p128, %p129
    %s132 = sadd.s32 %s131, 1
    %p135 = scmp.eq.s32.totalorder %s13, 1
    %p136 = scmp.ne.s32.totalorder %s131, %s133
    %p137 = scmp.eq.s32.totalorder %s13, 0
    %p138 = por %p136, %p137
    %p139 = scmp.ne.s32.totalorder %s131, %s133
    %p140 = scmp.eq.s32.totalorder %s18, 1
    %p141 = por %p139, %p140
    %p142 = scmp.ne.s32.totalorder %s133, %s134
    %p143 = scmp.eq.s32.totalorder %s18, 0
    %p144 = por %p142, %p143
    %p145 = scmp.ne.s32.totalorder %s133, %s134
    %p146 = scmp.eq.s32.totalorder %s19, 1
    %p147 = por %p145, %p146
    %p149 = scmp.ne.s32.totalorder %s134, %s148
    %p150 = scmp.eq.s32.totalorder %s19, 0
    %p151 = por %p149, %p150
    %s153 = sadd.s32 %s152, 1
    %p156 = scmp.eq.s32.totalorder %s13, 1
    %p157 = scmp.ne.s32.totalorder %s152, %s154
    %p158 = scmp.eq.s32.totalorder %s13, 0
    %p159 = por %p157, %p158
    %p160 = scmp.ne.s32.totalorder %s152, %s154
    %p161 = scmp.eq.s32.totalorder %s18, 1
    %p162 = por %p160, %p161
    %p163 = scmp.ne.s32.totalorder %s154, %s155
    %p164 = scmp.eq.s32.totalorder %s18, 0
    %p165 = por %p163, %p164
    %p166 = scmp.ne.s32.totalorder %s154, %s155
    %p167 = scmp.eq.s32.totalorder %s19, 1
    %p168 = por %p166, %p167
    %p170 = scmp.ne.s32.totalorder %s155, %s169
    %p171 = scmp.eq.s32.totalorder %s19, 0
    %p172 = por %p170, %p171
    %s173 = ssub.s32 %s13, %s20
    %p174 = scmp.eq.s32.totalorder %s173, 0
    %s176 = sadd.s32 %s175, 1
    %s177 = scalar_select %p174, %s175, %s176
    %p180 = pneg %p174
    %p181 = scmp.eq.s32.totalorder %s13, 1
    %p182 = por %p180, %p181
    %p183 = scmp.ne.s32.totalorder %s175, %s178
    %p184 = scmp.eq.s32.totalorder %s13, 0
    %p185 = por %p183, %p184
    %p186 = scmp.ne.s32.totalorder %s175, %s178
    %p187 = scmp.eq.s32.totalorder %s18, 1
    %p188 = por %p186, %p187
    %p189 = scmp.ne.s32.totalorder %s178, %s179
    %p190 = scmp.eq.s32.totalorder %s18, 0
    %p191 = por %p189, %p190
    %p192 = scmp.ne.s32.totalorder %s178, %s179
    %p193 = scmp.eq.s32.totalorder %s19, 1
    %p194 = por %p192, %p193
    %p196 = scmp.ne.s32.totalorder %s179, %s195
    %p197 = scmp.eq.s32.totalorder %s19, 0
    %p198 = por %p196, %p197
    %p199 = scmp.le.s32.totalorder 1, %s13
    %p200 = scmp.lt.s32.totalorder %s13, 3
    %p201 = pnand %p199, %p200
    %p202 = pneg %p201
    // Predicated region
    $region9: #{idcnn_forward.4} parent=5 // pred_check
      _
    $region10: #{idcnn_forward.4} parent=5 // pred_check_branch
      %204 = sbr.rel (%p201) target = $region12
    $region11: #{idcnn_forward.4} parent=5 // pred_region
      %s205 = ssub.s32 %s13, 1
      // Predicated region
      $region13: #{idcnn_forward.4} parent=11 // pred_check
        %p206 = pneg %p60
      $region14: #{idcnn_forward.4} parent=11 // pred_check_branch
        %208 = sbr.rel (%p206) target = $region16
      $region15: #{idcnn_forward.4} parent=11 // pred_region
        _
      $region16: #{idcnn_forward.4} parent=11 // pred_fallthru
        _
      // Predicated region
      $region17: #{idcnn_forward.4} parent=11 // pred_check
        %p209 = pneg %p81
      $region18: #{idcnn_forward.4} parent=11 // pred_check_branch
        %211 = sbr.rel (%p209) target = $region20
      $region19: #{idcnn_forward.4} parent=11 // pred_region
        _
      $region20: #{idcnn_forward.4} parent=11 // pred_fallthru
        _
      // Predicated region
      $region21: #{idcnn_forward.4} parent=11 // pred_check
        %p212 = pneg %p102
      $region22: #{idcnn_forward.4} parent=11 // pred_check_branch
        %214 = sbr.rel (%p212) target = $region24
      $region23: #{idcnn_forward.4} parent=11 // pred_region
        _
      $region24: #{idcnn_forward.4} parent=11 // pred_fallthru
        _
      // Predicated region
      $region25: #{idcnn_forward.4} parent=11 // pred_check
        %p215 = pneg %p123
      $region26: #{idcnn_forward.4} parent=11 // pred_check_branch
        %217 = sbr.rel (%p215) target = $region28
      $region27: #{idcnn_forward.4} parent=11 // pred_region
        _
      $region28: #{idcnn_forward.4} parent=11 // pred_fallthru
        _
      // Predicated region
      $region29: #{idcnn_forward.4} parent=11 // pred_check
        %p218 = pneg %p144
      $region30: #{idcnn_forward.4} parent=11 // pred_check_branch
        %220 = sbr.rel (%p218) target = $region32
      $region31: #{idcnn_forward.4} parent=11 // pred_region
        _
      $region32: #{idcnn_forward.4} parent=11 // pred_fallthru
        _
      // Predicated region
      $region33: #{idcnn_forward.4} parent=11 // pred_check
        %p221 = pneg %p165
      $region34: #{idcnn_forward.4} parent=11 // pred_check_branch
        %223 = sbr.rel (%p221) target = $region36
      $region35: #{idcnn_forward.4} parent=11 // pred_region
        _
      $region36: #{idcnn_forward.4} parent=11 // pred_fallthru
        _
    $region12: #{idcnn_forward.4} parent=5 // pred_fallthru
      _
    %p224 = scmp.lt.s32.totalorder %s13, 2
    // Predicated region
    $region37: #{idcnn_forward.4} parent=5 // pred_check
      %p225 = pneg %p224
    $region38: #{idcnn_forward.4} parent=5 // pred_check_branch
      %227 = sbr.rel (%p225) target = $region40
    $region39: #{idcnn_forward.4} parent=5 // pred_region
      // Predicated region
      $region41: #{idcnn_forward.4} parent=39 // pred_check
        %p228 = pneg %p33
      $region42: #{idcnn_forward.4} parent=39 // pred_check_branch
        %230 = sbr.rel (%p228) target = $region44
      $region43: #{idcnn_forward.4} parent=39 // pred_region
        %p231 = scmp.lt.s32.totalorder %s13, 1
        %s232 = scalar_select %p231, %s13, 1
        %s233 = smul.addr %s232, 8
        %s234 = scalar_lea.vmem %s0, %s233
      $region44: #{idcnn_forward.4} parent=39 // pred_fallthru
        _
    $region40: #{idcnn_forward.4} parent=5 // pred_fallthru
      _
    %p235 = scmp.le.s32.totalorder 1, %s13
    %p236 = scmp.lt.s32.totalorder %s13, 3
    %p237 = pnand %p235, %p236
    %p238 = pneg %p237
    // Predicated region
    $region45: #{idcnn_forward.4} parent=5 // pred_check
      _
    $region46: #{idcnn_forward.4} parent=5 // pred_check_branch
      %240 = sbr.rel (%p237) target = $region48
    $region47: #{idcnn_forward.4} parent=5 // pred_region
      %s241 = ssub.s32 %s13, 1
      %p242 = scmp.lt.s32.totalorder %s18, 1
      %s243 = scalar_select %p242, %s18, 1
      %s244 = smul.addr %s243, 8
      %s245 = scalar_lea.vmem %s0, %s244
      %p246 = pneg %p39
      %p247 = pneg %p36
      %p248 = pneg %p60
      %p249 = pneg %p57
      %p250 = pneg %p81
      %p251 = pneg %p78
      %p252 = pneg %p102
      %p253 = pneg %p99
      %p254 = pneg %p123
      %p255 = pneg %p120
      %p256 = pneg %p144
      %p257 = pneg %p141
      %p258 = pneg %p165
      %p259 = pneg %p162
      %p260 = pneg %p191
      %p261 = pneg %p188
      %p262 = scmp.lt.s32.totalorder %s18, 1
      %s263 = scalar_select %p262, %s18, 1
      %s264 = smul.addr %s263, 8
      %s265 = scalar_lea.vmem %s7, %s264
      %p266 = scmp.lt.s32.totalorder %s18, 1
      %s267 = scalar_select %p266, %s18, 1
      %s268 = smul.addr %s267, 8
      %s269 = scalar_lea.vmem %s0, %s268
      %p270 = scmp.lt.s32.totalorder %s18, 1
      %s271 = scalar_select %p270, %s18, 1
      %s272 = smul.addr %s271, 8
      %s273 = scalar_lea.vmem %s7, %s272
      %v274 = vld [vmem:[%s269] sm:$0xff]
      %v275 = vlaneseq
      %v276 = vand.u32 %v275, 127
      %vm277 = vcmp.lt.s32.totalorder %v276, 16
      %v278 = vld [vmem:[%s1] sm:$0xff]
      %vm279 = vcmask 64512
      %v281 = vsel %vm279, %v278, 0
      %283 = vmatprep.subr.mxu0 0.0
      %284 = vmatpush1.msra.mxu0 0.0
      %285 = vmatprep.subr.mxu0 0.0
      %286 = vmatpush1.msra.mxu0 0.0
      %287 = vmatprep.subr.mxu0 0.0
      %288 = vmatpush1.msra.mxu0 0.0
      %289 = vmatprep.subr.mxu0 0.0
      %290 = vmatpush1.msra.mxu0 0.0
      %291 = vmatprep.subr.mxu0 0.0
      %292 = vmatpush1.msra.mxu0 0.0
      %293 = vmatprep.subr.mxu0 0.0
      %294 = vmatpush1.msra.mxu0 0.0
      %295 = vmatprep.subr.mxu0 0.0
      %296 = vmatpush1.msra.mxu0 0.0
      %297 = vmatprep.subr.mxu0 0.0
      %298 = vmatpush1.msra.mxu0 0.0
      %299 = vmatprep.subr.mxu0 0.0
      %300 = vmatpush1.msra.mxu0 0.0
      %301 = vmatprep.subr.mxu0 0.0
      %302 = vmatpush1.msra.mxu0 0.0
      %303 = vmatprep.subr.mxu0 0.0
      %304 = vmatpush1.msra.mxu0 0.0
      %305 = vmatprep.subr.mxu0 0.0
      %306 = vmatpush1.msra.mxu0 0.0
      %307 = vmatprep.subr.mxu0 0.0
      %308 = vmatpush1.msra.mxu0 0.0
      %309 = vmatprep.subr.mxu0 0.0
      %310 = vmatpush1.msra.mxu0 0.0
      %311 = vmatprep.subr.mxu0 0.0
      %312 = vmatpush1.msra.mxu0 0.0
      %313 = vmatprep.subr.mxu0 0.0
      %314 = vmatpush1.msra.mxu0 %v274
      %315 = vmatprep.subr.mxu0 0.0
      %316 = vmatpush2.msra.mxu0 0.0
      %317 = vmatprep.subr.mxu0 0.0
      %318 = vmatpush2.msra.mxu0 0.0
      %319 = vmatprep.subr.mxu0 0.0
      %320 = vmatpush2.msra.mxu0 0.0
      %321 = vmatprep.subr.mxu0 0.0
      %322 = vmatpush2.msra.mxu0 0.0
      %323 = vmatprep.subr.mxu0 0.0
      %324 = vmatpush2.msra.mxu0 0.0
      %325 = vmatprep.subr.mxu0 0.0
      %326 = vmatpush2.msra.mxu0 0.0
      %327 = vmatprep.subr.mxu0 0.0
      %328 = vmatpush2.msra.mxu0 0.0
      %329 = vmatprep.subr.mxu0 0.0
      %330 = vmatpush2.msra.mxu0 0.0
      %331 = vmatprep.subr.mxu0 0.0
      %332 = vmatpush2.msra.mxu0 0.0
      %333 = vmatprep.subr.mxu0 0.0
      %334 = vmatpush2.msra.mxu0 0.0
      %335 = vmatprep.subr.mxu0 0.0
      %336 = vmatpush2.msra.mxu0 0.0
      %337 = vmatprep.subr.mxu0 0.0
      %338 = vmatpush2.msra.mxu0 0.0
      %339 = vmatprep.subr.mxu0 0.0
      %340 = vmatpush2.msra.mxu0 0.0
      %341 = vmatprep.subr.mxu0 0.0
      %342 = vmatpush2.msra.mxu0 0.0
      %343 = vmatprep.subr.mxu0 0.0
      %344 = vmatpush2.msra.mxu0 0.0
      %345 = vmatprep.subr.mxu0 0.0
      %346 = vmatpush2.msra.mxu0 0.0
      %347 = vmatprep.mubr.f32.mxu0 0.0
      %348 = vmatmul.mubr.f32.gmra.mxu0 %v281
      %v349 = vpop.f32.mrf.mxu0
      %v350 = vadd.f32 0.0, %v349
      %v351 = vpop.f32.mrf.mxu0
      %352 = vdwg.mxu0
      %s353 = scalar_lea.vmem %s1, 8
      %v354 = vld [vmem:[%s353] sm:$0xff]
      %s355 = scalar_lea.vmem %s1, 16
      %v356 = vld [vmem:[%s355] sm:$0xff]
      %v358 = vsel %vm279, %v356, 0
      %360 = vmatprep.subr.mxu0 0.0
      %361 = vmatpush1.msra.mxu0 0.0
      %362 = vmatprep.subr.mxu0 0.0
      %363 = vmatpush1.msra.mxu0 0.0
      %364 = vmatprep.subr.mxu0 0.0
      %365 = vmatpush1.msra.mxu0 0.0
      %366 = vmatprep.subr.mxu0 0.0
      %367 = vmatpush1.msra.mxu0 0.0
      %368 = vmatprep.subr.mxu0 0.0
      %369 = vmatpush1.msra.mxu0 0.0
      %370 = vmatprep.subr.mxu0 0.0
      %371 = vmatpush1.msra.mxu0 0.0
      %372 = vmatprep.subr.mxu0 0.0
      %373 = vmatpush1.msra.mxu0 0.0
      %374 = vmatprep.subr.mxu0 0.0
      %375 = vmatpush1.msra.mxu0 0.0
      %376 = vmatprep.subr.mxu0 0.0
      %377 = vmatpush1.msra.mxu0 0.0
      %378 = vmatprep.subr.mxu0 0.0
      %379 = vmatpush1.msra.mxu0 0.0
      %380 = vmatprep.subr.mxu0 0.0
      %381 = vmatpush1.msra.mxu0 0.0
      %382 = vmatprep.subr.mxu0 0.0
      %383 = vmatpush1.msra.mxu0 0.0
      %384 = vmatprep.subr.mxu0 0.0
      %385 = vmatpush1.msra.mxu0 0.0
      %386 = vmatprep.subr.mxu0 0.0
      %387 = vmatpush1.msra.mxu0 0.0
      %388 = vmatprep.subr.mxu0 0.0
      %389 = vmatpush1.msra.mxu0 0.0
      %390 = vmatprep.subr.mxu0 0.0
      %391 = vmatpush1.msra.mxu0 %v274
      %392 = vmatprep.subr.mxu0 0.0
      %393 = vmatpush2.msra.mxu0 0.0
      %394 = vmatprep.subr.mxu0 0.0
      %395 = vmatpush2.msra.mxu0 0.0
      %396 = vmatprep.subr.mxu0 0.0
      %397 = vmatpush2.msra.mxu0 0.0
      %398 = vmatprep.subr.mxu0 0.0
      %399 = vmatpush2.msra.mxu0 0.0
      %400 = vmatprep.subr.mxu0 0.0
      %401 = vmatpush2.msra.mxu0 0.0
      %402 = vmatprep.subr.mxu0 0.0
      %403 = vmatpush2.msra.mxu0 0.0
      %404 = vmatprep.subr.mxu0 0.0
      %405 = vmatpush2.msra.mxu0 0.0
      %406 = vmatprep.subr.mxu0 0.0
      %407 = vmatpush2.msra.mxu0 0.0
      %408 = vmatprep.subr.mxu0 0.0
      %409 = vmatpush2.msra.mxu0 0.0
      %410 = vmatprep.subr.mxu0 0.0
      %411 = vmatpush2.msra.mxu0 0.0
      %412 = vmatprep.subr.mxu0 0.0
      %413 = vmatpush2.msra.mxu0 0.0
      %414 = vmatprep.subr.mxu0 0.0
      %415 = vmatpush2.msra.mxu0 0.0
      %416 = vmatprep.subr.mxu0 0.0
      %417 = vmatpush2.msra.mxu0 0.0
      %418 = vmatprep.subr.mxu0 0.0
      %419 = vmatpush2.msra.mxu0 0.0
      %420 = vmatprep.subr.mxu0 0.0
      %421 = vmatpush2.msra.mxu0 0.0
      %422 = vmatprep.subr.mxu0 0.0
      %423 = vmatpush2.msra.mxu0 0.0
      %424 = vmatprep.mubr.f32.mxu0 0.0
      %425 = vmatmul.mubr.f32.gmra.mxu0 %v358
      %v426 = vpop.f32.mrf.mxu0
      %v427 = vadd.f32 0.0, %v426
      %v428 = vpop.f32.mrf.mxu0
      %429 = vdwg.mxu0
      %vm430 = vcmp.ge.s32.totalorder %v276, 1
      %431 = vrot.lane.b32.xlu0 %v350, 1
      %v432 = vpop.permute.xlu0 %431
      %v433 = vsel %vm430, %v432, 0.0
      %v435 = vsel %vm279, %v354, 0
      %437 = vmatprep.subr.mxu0 0.0
      %438 = vmatpush1.msra.mxu0 0.0
      %439 = vmatprep.subr.mxu0 0.0
      %440 = vmatpush1.msra.mxu0 0.0
      %441 = vmatprep.subr.mxu0 0.0
      %442 = vmatpush1.msra.mxu0 0.0
      %443 = vmatprep.subr.mxu0 0.0
      %444 = vmatpush1.msra.mxu0 0.0
      %445 = vmatprep.subr.mxu0 0.0
      %446 = vmatpush1.msra.mxu0 0.0
      %447 = vmatprep.subr.mxu0 0.0
      %448 = vmatpush1.msra.mxu0 0.0
      %449 = vmatprep.subr.mxu0 0.0
      %450 = vmatpush1.msra.mxu0 0.0
      %451 = vmatprep.subr.mxu0 0.0
      %452 = vmatpush1.msra.mxu0 0.0
      %453 = vmatprep.subr.mxu0 0.0
      %454 = vmatpush1.msra.mxu0 0.0
      %455 = vmatprep.subr.mxu0 0.0
      %456 = vmatpush1.msra.mxu0 0.0
      %457 = vmatprep.subr.mxu0 0.0
      %458 = vmatpush1.msra.mxu0 0.0
      %459 = vmatprep.subr.mxu0 0.0
      %460 = vmatpush1.msra.mxu0 0.0
      %461 = vmatprep.subr.mxu0 0.0
      %462 = vmatpush1.msra.mxu0 0.0
      %463 = vmatprep.subr.mxu0 0.0
      %464 = vmatpush1.msra.mxu0 0.0
      %465 = vmatprep.subr.mxu0 0.0
      %466 = vmatpush1.msra.mxu0 0.0
      %467 = vmatprep.subr.mxu0 0.0
      %468 = vmatpush1.msra.mxu0 %v274
      %469 = vmatprep.subr.mxu0 0.0
      %470 = vmatpush2.msra.mxu0 0.0
      %471 = vmatprep.subr.mxu0 0.0
      %472 = vmatpush2.msra.mxu0 0.0
      %473 = vmatprep.subr.mxu0 0.0
      %474 = vmatpush2.msra.mxu0 0.0
      %475 = vmatprep.subr.mxu0 0.0
      %476 = vmatpush2.msra.mxu0 0.0
      %477 = vmatprep.subr.mxu0 0.0
      %478 = vmatpush2.msra.mxu0 0.0
      %479 = vmatprep.subr.mxu0 0.0
      %480 = vmatpush2.msra.mxu0 0.0
      %481 = vmatprep.subr.mxu0 0.0
      %482 = vmatpush2.msra.mxu0 0.0
      %483 = vmatprep.subr.mxu0 0.0
      %484 = vmatpush2.msra.mxu0 0.0
      %485 = vmatprep.subr.mxu0 0.0
      %486 = vmatpush2.msra.mxu0 0.0
      %487 = vmatprep.subr.mxu0 0.0
      %488 = vmatpush2.msra.mxu0 0.0
      %489 = vmatprep.subr.mxu0 0.0
      %490 = vmatpush2.msra.mxu0 0.0
      %491 = vmatprep.subr.mxu0 0.0
      %492 = vmatpush2.msra.mxu0 0.0
      %493 = vmatprep.subr.mxu0 0.0
      %494 = vmatpush2.msra.mxu0 0.0
      %495 = vmatprep.subr.mxu0 0.0
      %496 = vmatpush2.msra.mxu0 0.0
      %497 = vmatprep.subr.mxu0 0.0
      %498 = vmatpush2.msra.mxu0 0.0
      %499 = vmatprep.subr.mxu0 0.0
      %500 = vmatpush2.msra.mxu0 0.0
      %501 = vmatprep.mubr.f32.mxu0 0.0
      %502 = vmatmul.mubr.f32.gmra.mxu0 %v435
      %v503 = vpop.f32.mrf.mxu0
      %v504 = vadd.f32 %v433, %v503
      %v505 = vpop.f32.mrf.mxu0
      %506 = vdwg.mxu0
      %vm507 = vcmp.lt.s32.totalorder %v276, 127
      %508 = vrot.lane.b32.xlu0 %v427, 127
      %v509 = vpop.permute.xlu0 %508
      %v510 = vsel %vm507, %v509, 0.0
      %v511 = vadd.f32 %v504, %v510
      %v512 = vld [vmem:[%s2] sm:$0xff]
      %514 = vset.pattern.permute.xlu0 0
      %515 = vperm.xlu0 %514, %v512
      %v516 = vpop.permute.xlu0 %515
      %v518 = vadd.f32 %v511, %v516
      %v519 = vmax.f32 %v518, 0.0
      %v520 = vrot.slane %v519, 4
      %v521 = vadd.f32 %v519, %v520
      %v522 = vrot.slane %v521, 2
      %v523 = vadd.f32 %v521, %v522
      %v524 = vrot.slane %v523, 1
      %v525 = vadd.f32 %v523, %v524
      %v526 = vrcp.pop 8.0
      %v527 = vmul.f32 %v525, %v526
      %v528 = vsub.f32 %v519, %v527
      %v529 = vmul.f32 %v528, %v528
      %v530 = vrot.slane %v529, 4
      %v531 = vadd.f32 %v529, %v530
      %v532 = vrot.slane %v531, 2
      %v533 = vadd.f32 %v531, %v532
      %v534 = vrot.slane %v533, 1
      %v535 = vadd.f32 %v533, %v534
      %v536 = vmul.f32 %v535, %v526
      %v537 = vadd.f32 %v536, 1e-05
      %v538 = vrsqrt.pop %v537
      %v539 = vmul.f32 %v528, %v538
      %v540 = vsel %vm277, %v539, 0.0
      %v541 = vld [vmem:[%s3] sm:$0xff]
      %v543 = vsel %vm279, %v541, 0
      %545 = vmatprep.subr.mxu0 0.0
      %546 = vmatpush1.msra.mxu0 0.0
      %547 = vmatprep.subr.mxu0 0.0
      %548 = vmatpush1.msra.mxu0 0.0
      %549 = vmatprep.subr.mxu0 0.0
      %550 = vmatpush1.msra.mxu0 0.0
      %551 = vmatprep.subr.mxu0 0.0
      %552 = vmatpush1.msra.mxu0 0.0
      %553 = vmatprep.subr.mxu0 0.0
      %554 = vmatpush1.msra.mxu0 0.0
      %555 = vmatprep.subr.mxu0 0.0
      %556 = vmatpush1.msra.mxu0 0.0
      %557 = vmatprep.subr.mxu0 0.0
      %558 = vmatpush1.msra.mxu0 0.0
      %559 = vmatprep.subr.mxu0 0.0
      %560 = vmatpush1.msra.mxu0 0.0
      %561 = vmatprep.subr.mxu0 0.0
      %562 = vmatpush1.msra.mxu0 0.0
      %563 = vmatprep.subr.mxu0 0.0
      %564 = vmatpush1.msra.mxu0 0.0
      %565 = vmatprep.subr.mxu0 0.0
      %566 = vmatpush1.msra.mxu0 0.0
      %567 = vmatprep.subr.mxu0 0.0
      %568 = vmatpush1.msra.mxu0 0.0
      %569 = vmatprep.subr.mxu0 0.0
      %570 = vmatpush1.msra.mxu0 0.0
      %571 = vmatprep.subr.mxu0 0.0
      %572 = vmatpush1.msra.mxu0 0.0
      %573 = vmatprep.subr.mxu0 0.0
      %574 = vmatpush1.msra.mxu0 0.0
      %575 = vmatprep.subr.mxu0 0.0
      %576 = vmatpush1.msra.mxu0 %v540
      %577 = vmatprep.subr.mxu0 0.0
      %578 = vmatpush2.msra.mxu0 0.0
      %579 = vmatprep.subr.mxu0 0.0
      %580 = vmatpush2.msra.mxu0 0.0
      %581 = vmatprep.subr.mxu0 0.0
      %582 = vmatpush2.msra.mxu0 0.0
      %583 = vmatprep.subr.mxu0 0.0
      %584 = vmatpush2.msra.mxu0 0.0
      %585 = vmatprep.subr.mxu0 0.0
      %586 = vmatpush2.msra.mxu0 0.0
      %587 = vmatprep.subr.mxu0 0.0
      %588 = vmatpush2.msra.mxu0 0.0
      %589 = vmatprep.subr.mxu0 0.0
      %590 = vmatpush2.msra.mxu0 0.0
      %591 = vmatprep.subr.mxu0 0.0
      %592 = vmatpush2.msra.mxu0 0.0
      %593 = vmatprep.subr.mxu0 0.0
      %594 = vmatpush2.msra.mxu0 0.0
      %595 = vmatprep.subr.mxu0 0.0
      %596 = vmatpush2.msra.mxu0 0.0
      %597 = vmatprep.subr.mxu0 0.0
      %598 = vmatpush2.msra.mxu0 0.0
      %599 = vmatprep.subr.mxu0 0.0
      %600 = vmatpush2.msra.mxu0 0.0
      %601 = vmatprep.subr.mxu0 0.0
      %602 = vmatpush2.msra.mxu0 0.0
      %603 = vmatprep.subr.mxu0 0.0
      %604 = vmatpush2.msra.mxu0 0.0
      %605 = vmatprep.subr.mxu0 0.0
      %606 = vmatpush2.msra.mxu0 0.0
      %607 = vmatprep.subr.mxu0 0.0
      %608 = vmatpush2.msra.mxu0 0.0
      %609 = vmatprep.mubr.f32.mxu0 0.0
      %610 = vmatmul.mubr.f32.gmra.mxu0 %v543
      %v611 = vpop.f32.mrf.mxu0
      %v612 = vadd.f32 0.0, %v611
      %v613 = vpop.f32.mrf.mxu0
      %614 = vdwg.mxu0
      %s615 = scalar_lea.vmem %s3, 8
      %v616 = vld [vmem:[%s615] sm:$0xff]
      %s617 = scalar_lea.vmem %s3, 16
      %v618 = vld [vmem:[%s617] sm:$0xff]
      %v620 = vsel %vm279, %v618, 0
      %622 = vmatprep.subr.mxu0 0.0
      %623 = vmatpush1.msra.mxu0 0.0
      %624 = vmatprep.subr.mxu0 0.0
      %625 = vmatpush1.msra.mxu0 0.0
      %626 = vmatprep.subr.mxu0 0.0
      %627 = vmatpush1.msra.mxu0 0.0
      %628 = vmatprep.subr.mxu0 0.0
      %629 = vmatpush1.msra.mxu0 0.0
      %630 = vmatprep.subr.mxu0 0.0
      %631 = vmatpush1.msra.mxu0 0.0
      %632 = vmatprep.subr.mxu0 0.0
      %633 = vmatpush1.msra.mxu0 0.0
      %634 = vmatprep.subr.mxu0 0.0
      %635 = vmatpush1.msra.mxu0 0.0
      %636 = vmatprep.subr.mxu0 0.0
      %637 = vmatpush1.msra.mxu0 0.0
      %638 = vmatprep.subr.mxu0 0.0
      %639 = vmatpush1.msra.mxu0 0.0
      %640 = vmatprep.subr.mxu0 0.0
      %641 = vmatpush1.msra.mxu0 0.0
      %642 = vmatprep.subr.mxu0 0.0
      %643 = vmatpush1.msra.mxu0 0.0
      %644 = vmatprep.subr.mxu0 0.0
      %645 = vmatpush1.msra.mxu0 0.0
      %646 = vmatprep.subr.mxu0 0.0
      %647 = vmatpush1.msra.mxu0 0.0
      %648 = vmatprep.subr.mxu0 0.0
      %649 = vmatpush1.msra.mxu0 0.0
      %650 = vmatprep.subr.mxu0 0.0
      %651 = vmatpush1.msra.mxu0 0.0
      %652 = vmatprep.subr.mxu0 0.0
      %653 = vmatpush1.msra.mxu0 %v540
      %654 = vmatprep.subr.mxu0 0.0
      %655 = vmatpush2.msra.mxu0 0.0
      %656 = vmatprep.subr.mxu0 0.0
      %657 = vmatpush2.msra.mxu0 0.0
      %658 = vmatprep.subr.mxu0 0.0
      %659 = vmatpush2.msra.mxu0 0.0
      %660 = vmatprep.subr.mxu0 0.0
      %661 = vmatpush2.msra.mxu0 0.0
      %662 = vmatprep.subr.mxu0 0.0
      %663 = vmatpush2.msra.mxu0 0.0
      %664 = vmatprep.subr.mxu0 0.0
      %665 = vmatpush2.msra.mxu0 0.0
      %666 = vmatprep.subr.mxu0 0.0
      %667 = vmatpush2.msra.mxu0 0.0
      %668 = vmatprep.subr.mxu0 0.0
      %669 = vmatpush2.msra.mxu0 0.0
      %670 = vmatprep.subr.mxu0 0.0
      %671 = vmatpush2.msra.mxu0 0.0
      %672 = vmatprep.subr.mxu0 0.0
      %673 = vmatpush2.msra.mxu0 0.0
      %674 = vmatprep.subr.mxu0 0.0
      %675 = vmatpush2.msra.mxu0 0.0
      %676 = vmatprep.subr.mxu0 0.0
      %677 = vmatpush2.msra.mxu0 0.0
      %678 = vmatprep.subr.mxu0 0.0
      %679 = vmatpush2.msra.mxu0 0.0
      %680 = vmatprep.subr.mxu0 0.0
      %681 = vmatpush2.msra.mxu0 0.0
      %682 = vmatprep.subr.mxu0 0.0
      %683 = vmatpush2.msra.mxu0 0.0
      %684 = vmatprep.subr.mxu0 0.0
      %685 = vmatpush2.msra.mxu0 0.0
      %686 = vmatprep.mubr.f32.mxu0 0.0
      %687 = vmatmul.mubr.f32.gmra.mxu0 %v620
      %v688 = vpop.f32.mrf.mxu0
      %v689 = vadd.f32 0.0, %v688
      %v690 = vpop.f32.mrf.mxu0
      %691 = vdwg.mxu0
      %692 = vrot.lane.b32.xlu0 %v612, 1
      %v693 = vpop.permute.xlu0 %692
      %v694 = vsel %vm430, %v693, 0.0
      %v696 = vsel %vm279, %v616, 0
      %698 = vmatprep.subr.mxu0 0.0
      %699 = vmatpush1.msra.mxu0 0.0
      %700 = vmatprep.subr.mxu0 0.0
      %701 = vmatpush1.msra.mxu0 0.0
      %702 = vmatprep.subr.mxu0 0.0
      %703 = vmatpush1.msra.mxu0 0.0
      %704 = vmatprep.subr.mxu0 0.0
      %705 = vmatpush1.msra.mxu0 0.0
      %706 = vmatprep.subr.mxu0 0.0
      %707 = vmatpush1.msra.mxu0 0.0
      %708 = vmatprep.subr.mxu0 0.0
      %709 = vmatpush1.msra.mxu0 0.0
      %710 = vmatprep.subr.mxu0 0.0
      %711 = vmatpush1.msra.mxu0 0.0
      %712 = vmatprep.subr.mxu0 0.0
      %713 = vmatpush1.msra.mxu0 0.0
      %714 = vmatprep.subr.mxu0 0.0
      %715 = vmatpush1.msra.mxu0 0.0
      %716 = vmatprep.subr.mxu0 0.0
      %717 = vmatpush1.msra.mxu0 0.0
      %718 = vmatprep.subr.mxu0 0.0
      %719 = vmatpush1.msra.mxu0 0.0
      %720 = vmatprep.subr.mxu0 0.0
      %721 = vmatpush1.msra.mxu0 0.0
      %722 = vmatprep.subr.mxu0 0.0
      %723 = vmatpush1.msra.mxu0 0.0
      %724 = vmatprep.subr.mxu0 0.0
      %725 = vmatpush1.msra.mxu0 0.0
      %726 = vmatprep.subr.mxu0 0.0
      %727 = vmatpush1.msra.mxu0 0.0
      %728 = vmatprep.subr.mxu0 0.0
      %729 = vmatpush1.msra.mxu0 %v540
      %730 = vmatprep.subr.mxu0 0.0
      %731 = vmatpush2.msra.mxu0 0.0
      %732 = vmatprep.subr.mxu0 0.0
      %733 = vmatpush2.msra.mxu0 0.0
      %734 = vmatprep.subr.mxu0 0.0
      %735 = vmatpush2.msra.mxu0 0.0
      %736 = vmatprep.subr.mxu0 0.0
      %737 = vmatpush2.msra.mxu0 0.0
      %738 = vmatprep.subr.mxu0 0.0
      %739 = vmatpush2.msra.mxu0 0.0
      %740 = vmatprep.subr.mxu0 0.0
      %741 = vmatpush2.msra.mxu0 0.0
      %742 = vmatprep.subr.mxu0 0.0
      %743 = vmatpush2.msra.mxu0 0.0
      %744 = vmatprep.subr.mxu0 0.0
      %745 = vmatpush2.msra.mxu0 0.0
      %746 = vmatprep.subr.mxu0 0.0
      %747 = vmatpush2.msra.mxu0 0.0
      %748 = vmatprep.subr.mxu0 0.0
      %749 = vmatpush2.msra.mxu0 0.0
      %750 = vmatprep.subr.mxu0 0.0
      %751 = vmatpush2.msra.mxu0 0.0
      %752 = vmatprep.subr.mxu0 0.0
      %753 = vmatpush2.msra.mxu0 0.0
      %754 = vmatprep.subr.mxu0 0.0
      %755 = vmatpush2.msra.mxu0 0.0
      %756 = vmatprep.subr.mxu0 0.0
      %757 = vmatpush2.msra.mxu0 0.0
      %758 = vmatprep.subr.mxu0 0.0
      %759 = vmatpush2.msra.mxu0 0.0
      %760 = vmatprep.subr.mxu0 0.0
      %761 = vmatpush2.msra.mxu0 0.0
      %762 = vmatprep.mubr.f32.mxu0 0.0
      %763 = vmatmul.mubr.f32.gmra.mxu0 %v696
      %v764 = vpop.f32.mrf.mxu0
      %v765 = vadd.f32 %v694, %v764
      %v766 = vpop.f32.mrf.mxu0
      %767 = vdwg.mxu0
      %768 = vrot.lane.b32.xlu0 %v689, 127
      %v769 = vpop.permute.xlu0 %768
      %v770 = vsel %vm507, %v769, 0.0
      %v771 = vadd.f32 %v765, %v770
      %v772 = vld [vmem:[%s4] sm:$0xff]
      %774 = vset.pattern.permute.xlu0 0
      %775 = vperm.xlu0 %774, %v772
      %v776 = vpop.permute.xlu0 %775
      %v778 = vadd.f32 %v771, %v776
      %v779 = vsel %vm277, %v778, 0.0
      %v780 = vld [vmem:[%s5] sm:$0xff]
      %v782 = vsel %vm279, %v780, 0
      %784 = vmatprep.subr.mxu0 0.0
      %785 = vmatpush1.msra.mxu0 0.0
      %786 = vmatprep.subr.mxu0 0.0
      %787 = vmatpush1.msra.mxu0 0.0
      %788 = vmatprep.subr.mxu0 0.0
      %789 = vmatpush1.msra.mxu0 0.0
      %790 = vmatprep.subr.mxu0 0.0
      %791 = vmatpush1.msra.mxu0 0.0
      %792 = vmatprep.subr.mxu0 0.0
      %793 = vmatpush1.msra.mxu0 0.0
      %794 = vmatprep.subr.mxu0 0.0
      %795 = vmatpush1.msra.mxu0 0.0
      %796 = vmatprep.subr.mxu0 0.0
      %797 = vmatpush1.msra.mxu0 0.0
      %798 = vmatprep.subr.mxu0 0.0
      %799 = vmatpush1.msra.mxu0 0.0
      %800 = vmatprep.subr.mxu0 0.0
      %801 = vmatpush1.msra.mxu0 0.0
      %802 = vmatprep.subr.mxu0 0.0
      %803 = vmatpush1.msra.mxu0 0.0
      %804 = vmatprep.subr.mxu0 0.0
      %805 = vmatpush1.msra.mxu0 0.0
      %806 = vmatprep.subr.mxu0 0.0
      %807 = vmatpush1.msra.mxu0 0.0
      %808 = vmatprep.subr.mxu0 0.0
      %809 = vmatpush1.msra.mxu0 0.0
      %810 = vmatprep.subr.mxu0 0.0
      %811 = vmatpush1.msra.mxu0 0.0
      %812 = vmatprep.subr.mxu0 0.0
      %813 = vmatpush1.msra.mxu0 0.0
      %814 = vmatprep.subr.mxu0 0.0
      %815 = vmatpush1.msra.mxu0 %v779
      %816 = vmatprep.subr.mxu0 0.0
      %817 = vmatpush2.msra.mxu0 0.0
      %818 = vmatprep.subr.mxu0 0.0
      %819 = vmatpush2.msra.mxu0 0.0
      %820 = vmatprep.subr.mxu0 0.0
      %821 = vmatpush2.msra.mxu0 0.0
      %822 = vmatprep.subr.mxu0 0.0
      %823 = vmatpush2.msra.mxu0 0.0
      %824 = vmatprep.subr.mxu0 0.0
      %825 = vmatpush2.msra.mxu0 0.0
      %826 = vmatprep.subr.mxu0 0.0
      %827 = vmatpush2.msra.mxu0 0.0
      %828 = vmatprep.subr.mxu0 0.0
      %829 = vmatpush2.msra.mxu0 0.0
      %830 = vmatprep.subr.mxu0 0.0
      %831 = vmatpush2.msra.mxu0 0.0
      %832 = vmatprep.subr.mxu0 0.0
      %833 = vmatpush2.msra.mxu0 0.0
      %834 = vmatprep.subr.mxu0 0.0
      %835 = vmatpush2.msra.mxu0 0.0
      %836 = vmatprep.subr.mxu0 0.0
      %837 = vmatpush2.msra.mxu0 0.0
      %838 = vmatprep.subr.mxu0 0.0
      %839 = vmatpush2.msra.mxu0 0.0
      %840 = vmatprep.subr.mxu0 0.0
      %841 = vmatpush2.msra.mxu0 0.0
      %842 = vmatprep.subr.mxu0 0.0
      %843 = vmatpush2.msra.mxu0 0.0
      %844 = vmatprep.subr.mxu0 0.0
      %845 = vmatpush2.msra.mxu0 0.0
      %846 = vmatprep.subr.mxu0 0.0
      %847 = vmatpush2.msra.mxu0 0.0
      %848 = vmatprep.mubr.f32.mxu0 0.0
      %849 = vmatmul.mubr.f32.gmra.mxu0 %v782
      %v850 = vpop.f32.mrf.mxu0
      %v851 = vadd.f32 0.0, %v850
      %v852 = vpop.f32.mrf.mxu0
      %853 = vdwg.mxu0
      %s854 = scalar_lea.vmem %s5, 8
      %v855 = vld [vmem:[%s854] sm:$0xff]
      %s856 = scalar_lea.vmem %s5, 16
      %v857 = vld [vmem:[%s856] sm:$0xff]
      %v859 = vsel %vm279, %v857, 0
      %861 = vmatprep.subr.mxu0 0.0
      %862 = vmatpush1.msra.mxu0 0.0
      %863 = vmatprep.subr.mxu0 0.0
      %864 = vmatpush1.msra.mxu0 0.0
      %865 = vmatprep.subr.mxu0 0.0
      %866 = vmatpush1.msra.mxu0 0.0
      %867 = vmatprep.subr.mxu0 0.0
      %868 = vmatpush1.msra.mxu0 0.0
      %869 = vmatprep.subr.mxu0 0.0
      %870 = vmatpush1.msra.mxu0 0.0
      %871 = vmatprep.subr.mxu0 0.0
      %872 = vmatpush1.msra.mxu0 0.0
      %873 = vmatprep.subr.mxu0 0.0
      %874 = vmatpush1.msra.mxu0 0.0
      %875 = vmatprep.subr.mxu0 0.0
      %876 = vmatpush1.msra.mxu0 0.0
      %877 = vmatprep.subr.mxu0 0.0
      %878 = vmatpush1.msra.mxu0 0.0
      %879 = vmatprep.subr.mxu0 0.0
      %880 = vmatpush1.msra.mxu0 0.0
      %881 = vmatprep.subr.mxu0 0.0
      %882 = vmatpush1.msra.mxu0 0.0
      %883 = vmatprep.subr.mxu0 0.0
      %884 = vmatpush1.msra.mxu0 0.0
      %885 = vmatprep.subr.mxu0 0.0
      %886 = vmatpush1.msra.mxu0 0.0
      %887 = vmatprep.subr.mxu0 0.0
      %888 = vmatpush1.msra.mxu0 0.0
      %889 = vmatprep.subr.mxu0 0.0
      %890 = vmatpush1.msra.mxu0 0.0
      %891 = vmatprep.subr.mxu0 0.0
      %892 = vmatpush1.msra.mxu0 %v779
      %893 = vmatprep.subr.mxu0 0.0
      %894 = vmatpush2.msra.mxu0 0.0
      %895 = vmatprep.subr.mxu0 0.0
      %896 = vmatpush2.msra.mxu0 0.0
      %897 = vmatprep.subr.mxu0 0.0
      %898 = vmatpush2.msra.mxu0 0.0
      %899 = vmatprep.subr.mxu0 0.0
      %900 = vmatpush2.msra.mxu0 0.0
      %901 = vmatprep.subr.mxu0 0.0
      %902 = vmatpush2.msra.mxu0 0.0
      %903 = vmatprep.subr.mxu0 0.0
      %904 = vmatpush2.msra.mxu0 0.0
      %905 = vmatprep.subr.mxu0 0.0
      %906 = vmatpush2.msra.mxu0 0.0
      %907 = vmatprep.subr.mxu0 0.0
      %908 = vmatpush2.msra.mxu0 0.0
      %909 = vmatprep.subr.mxu0 0.0
      %910 = vmatpush2.msra.mxu0 0.0
      %911 = vmatprep.subr.mxu0 0.0
      %912 = vmatpush2.msra.mxu0 0.0
      %913 = vmatprep.subr.mxu0 0.0
      %914 = vmatpush2.msra.mxu0 0.0
      %915 = vmatprep.subr.mxu0 0.0
      %916 = vmatpush2.msra.mxu0 0.0
      %917 = vmatprep.subr.mxu0 0.0
      %918 = vmatpush2.msra.mxu0 0.0
      %919 = vmatprep.subr.mxu0 0.0
      %920 = vmatpush2.msra.mxu0 0.0
      %921 = vmatprep.subr.mxu0 0.0
      %922 = vmatpush2.msra.mxu0 0.0
      %923 = vmatprep.subr.mxu0 0.0
      %924 = vmatpush2.msra.mxu0 0.0
      %925 = vmatprep.mubr.f32.mxu0 0.0
      %926 = vmatmul.mubr.f32.gmra.mxu0 %v859
      %v927 = vpop.f32.mrf.mxu0
      %v928 = vadd.f32 0.0, %v927
      %v929 = vpop.f32.mrf.mxu0
      %930 = vdwg.mxu0
      %vm931 = vcmp.ge.s32.totalorder %v276, 2
      %932 = vrot.lane.b32.xlu0 %v851, 2
      %v933 = vpop.permute.xlu0 %932
      %v934 = vsel %vm931, %v933, 0.0
      %v936 = vsel %vm279, %v855, 0
      %938 = vmatprep.subr.mxu0 0.0
      %939 = vmatpush1.msra.mxu0 0.0
      %940 = vmatprep.subr.mxu0 0.0
      %941 = vmatpush1.msra.mxu0 0.0
      %942 = vmatprep.subr.mxu0 0.0
      %943 = vmatpush1.msra.mxu0 0.0
      %944 = vmatprep.subr.mxu0 0.0
      %945 = vmatpush1.msra.mxu0 0.0
      %946 = vmatprep.subr.mxu0 0.0
      %947 = vmatpush1.msra.mxu0 0.0
      %948 = vmatprep.subr.mxu0 0.0
      %949 = vmatpush1.msra.mxu0 0.0
      %950 = vmatprep.subr.mxu0 0.0
      %951 = vmatpush1.msra.mxu0 0.0
      %952 = vmatprep.subr.mxu0 0.0
      %953 = vmatpush1.msra.mxu0 0.0
      %954 = vmatprep.subr.mxu0 0.0
      %955 = vmatpush1.msra.mxu0 0.0
      %956 = vmatprep.subr.mxu0 0.0
      %957 = vmatpush1.msra.mxu0 0.0
      %958 = vmatprep.subr.mxu0 0.0
      %959 = vmatpush1.msra.mxu0 0.0
      %960 = vmatprep.subr.mxu0 0.0
      %961 = vmatpush1.msra.mxu0 0.0
      %962 = vmatprep.subr.mxu0 0.0
      %963 = vmatpush1.msra.mxu0 0.0
      %964 = vmatprep.subr.mxu0 0.0
      %965 = vmatpush1.msra.mxu0 0.0
      %966 = vmatprep.subr.mxu0 0.0
      %967 = vmatpush1.msra.mxu0 0.0
      %968 = vmatprep.subr.mxu0 0.0
      %969 = vmatpush1.msra.mxu0 %v779
      %970 = vmatprep.subr.mxu0 0.0
      %971 = vmatpush2.msra.mxu0 0.0
      %972 = vmatprep.subr.mxu0 0.0
      %973 = vmatpush2.msra.mxu0 0.0
      %974 = vmatprep.subr.mxu0 0.0
      %975 = vmatpush2.msra.mxu0 0.0
      %976 = vmatprep.subr.mxu0 0.0
      %977 = vmatpush2.msra.mxu0 0.0
      %978 = vmatprep.subr.mxu0 0.0
      %979 = vmatpush2.msra.mxu0 0.0
      %980 = vmatprep.subr.mxu0 0.0
      %981 = vmatpush2.msra.mxu0 0.0
      %982 = vmatprep.subr.mxu0 0.0
      %983 = vmatpush2.msra.mxu0 0.0
      %984 = vmatprep.subr.mxu0 0.0
      %985 = vmatpush2.msra.mxu0 0.0
      %986 = vmatprep.subr.mxu0 0.0
      %987 = vmatpush2.msra.mxu0 0.0
      %988 = vmatprep.subr.mxu0 0.0
      %989 = vmatpush2.msra.mxu0 0.0
      %990 = vmatprep.subr.mxu0 0.0
      %991 = vmatpush2.msra.mxu0 0.0
      %992 = vmatprep.subr.mxu0 0.0
      %993 = vmatpush2.msra.mxu0 0.0
      %994 = vmatprep.subr.mxu0 0.0
      %995 = vmatpush2.msra.mxu0 0.0
      %996 = vmatprep.subr.mxu0 0.0
      %997 = vmatpush2.msra.mxu0 0.0
      %998 = vmatprep.subr.mxu0 0.0
      %999 = vmatpush2.msra.mxu0 0.0
      %1000 = vmatprep.subr.mxu0 0.0
      %1001 = vmatpush2.msra.mxu0 0.0
      %1002 = vmatprep.mubr.f32.mxu0 0.0
      %1003 = vmatmul.mubr.f32.gmra.mxu0 %v936
      %v1004 = vpop.f32.mrf.mxu0
      %v1005 = vadd.f32 %v934, %v1004
      %v1006 = vpop.f32.mrf.mxu0
      %1007 = vdwg.mxu0
      %vm1008 = vcmp.lt.s32.totalorder %v276, 126
      %1009 = vrot.lane.b32.xlu0 %v928, 126
      %v1010 = vpop.permute.xlu0 %1009
      %v1011 = vsel %vm1008, %v1010, 0.0
      %v1012 = vadd.f32 %v1005, %v1011
      %v1013 = vld [vmem:[%s6] sm:$0xff]
      %1015 = vset.pattern.permute.xlu0 0
      %1016 = vperm.xlu0 %1015, %v1013
      %v1017 = vpop.permute.xlu0 %1016
      %v1019 = vadd.f32 %v1012, %v1017
      %v1020 = vmax.f32 %v1019, 0.0
      %v1021 = vrot.slane %v1020, 4
      %v1022 = vadd.f32 %v1020, %v1021
      %v1023 = vrot.slane %v1022, 2
      %v1024 = vadd.f32 %v1022, %v1023
      %v1025 = vrot.slane %v1024, 1
      %v1026 = vadd.f32 %v1024, %v1025
      %v1027 = vmul.f32 %v1026, %v526
      %v1028 = vsub.f32 %v1020, %v1027
      %v1029 = vmul.f32 %v1028, %v1028
      %v1030 = vrot.slane %v1029, 4
      %v1031 = vadd.f32 %v1029, %v1030
      %v1032 = vrot.slane %v1031, 2
      %v1033 = vadd.f32 %v1031, %v1032
      %v1034 = vrot.slane %v1033, 1
      %v1035 = vadd.f32 %v1033, %v1034
      %v1036 = vmul.f32 %v1035, %v526
      %v1037 = vadd.f32 %v1036, 1e-05
      %v1038 = vrsqrt.pop %v1037
      %v1039 = vmul.f32 %v1028, %v1038
      %v1040 = vsel %vm277, %v1039, 0.0
      %1041 = vst [vmem:[%s273] sm:$0xff] %v1040
      %p1042 = scmp.lt.s32.totalorder %s18, 1
      %s1043 = scalar_select %p1042, %s18, 1
      %s1044 = smul.addr %s1043, 8
      %s1045 = scalar_lea.vmem %s7, %s1044
      // Predicated region
      $region49: #{idcnn_forward.4} parent=47 // pred_check
        %p1046 = pneg %p188
      $region50: #{idcnn_forward.4} parent=47 // pred_check_branch
        %1048 = sbr.rel (%p1046) target = $region52
      $region51: #{idcnn_forward.4} parent=47 // pred_region
        _
      $region52: #{idcnn_forward.4} parent=47 // pred_fallthru
        _
    $region48: #{idcnn_forward.4} parent=5 // pred_fallthru
      _
    %p1049 = scmp.le.s32.totalorder 2, %s13
    // Predicated region
    $region53: #{idcnn_forward.4} parent=5 // pred_check
      %p1050 = pneg %p1049
    $region54: #{idcnn_forward.4} parent=5 // pred_check_branch
      %1052 = sbr.rel (%p1050) target = $region56
    $region55: #{idcnn_forward.4} parent=5 // pred_region
      %s1053 = ssub.s32 %s13, 2
      // Predicated region
      $region57: #{idcnn_forward.4} parent=55 // pred_check
        %p1054 = pneg %p194
      $region58: #{idcnn_forward.4} parent=55 // pred_check_branch
        %1056 = sbr.rel (%p1054) target = $region60
      $region59: #{idcnn_forward.4} parent=55 // pred_region
        %p1057 = scmp.lt.s32.totalorder %s19, 1
        %s1058 = scalar_select %p1057, %s19, 1
        %s1059 = smul.addr %s1058, 8
        %s1060 = scalar_lea.vmem %s7, %s1059
      $region60: #{idcnn_forward.4} parent=55 // pred_fallthru
        _
    $region56: #{idcnn_forward.4} parent=5 // pred_fallthru
      _
  $region6: #{idcnn_forward.4} parent=0 // loop_footer
    %s17 = sadd.s32 1, %s13
  $region7: #{idcnn_forward.4} parent=0 // loop_footer_branch
    %12 = sbr.rel target = $region3
  $region8: #{idcnn_forward.4} parent=0 // loop_exit
    _

</llo_original>
